<compile_context>
chip_gen: v7x
topology: tpu7x:2x2x1
jax: 0.10.0
libtpu: 0.0.40
codegen_flags: <defaults>
</compile_context>

<pallas_src>
import jax
import jax.numpy as jnp
from jax.experimental import pallas as pl
from jax.experimental.pallas import tpu as pltpu


def _round_up(x, m):
    return ((x + m - 1) // m) * m


def _cdiv(a, b):
    return -(-a // b)


# --------------------------------------------------------------------------- #
# Synthetic PoseResNet backbone.
# PoseResNet is an injected sub-module in the original code (a full ResNet +
# deconv head).  Here it is a small deterministic stand-in with the same
# interface: returns (heatmaps, feature_before_final).  The hot path — 3x3 conv
# + bias + ReLU and the final 1x1 conv — runs inside one Pallas kernel, with
# im2col fused (shifted lane slices into a patches scratch) and spatial on the
# lane axis.
# --------------------------------------------------------------------------- #
def _make_backbone_kernel(H, W, HW, Nb, cin, cpad, cmid, nj, return_feat):
    def kernel(xf_ref, w1t_ref, b1_ref, w2t_ref, b2_ref, *rest):
        # xf_ref : (Nb, cin, Lpad)  halo-padded, row-flattened, lane-aligned images
        # w1t_ref: (cmid, 9*cpad)   3x3 conv weights, each tap zero-padded to cpad
        # b1_ref : (cmid, 1)        conv bias
        # w2t_ref: (nj, cmid)       final (1x1) weights, transposed
        # b2_ref : (nj, 1)          final bias
        # rest   : hm_ref (Nb,nj,HW) [, feat_ref (Nb,cmid,HW)], pscr (9*cpad, Nb*HW)
        if return_feat:
            hm_ref, feat_ref, pscr = rest
        else:
            hm_ref, pscr = rest
            feat_ref = None

        # Zero the patches scratch so the (cpad - cin) pad rows of every K-band
        # contribute exactly 0 (VMEM scratch is otherwise uninitialised; done
        # every step so it is correct under megacore grid partitioning).
        pscr[...] = jnp.zeros_like(pscr)

        # Hoisted boundary masks (JAX does not CSE broadcasts; compute once).
        col = jax.lax.broadcasted_iota(jnp.int32, (1, HW), 1) % W
        not_left = col != 0            # column 0 has no left neighbour
        not_right = col != W - 1       # column W-1 has no right neighbour

        # Fused im2col: each (dy, dx) tap of each image is a static lane slice of
        # the flattened slab, masked at the W boundary, written to an 8-aligned
        # K-band / 128-aligned lane slab of the patches scratch.
        for t in range(9):
            dy, dx = t // 3, t % 3
            off = dy * W + dx                           # static, >= 0 by padding
            for n in range(Nb):
                slab = xf_ref[n, :, pl.ds(off, HW)]     # (cin, HW) shifted view
                if dx == 0:
                    slab = jnp.where(not_left, slab, 0.0)
                elif dx == 2:
                    slab = jnp.where(not_right, slab, 0.0)
                pscr[pl.ds(t * cpad, cin), pl.ds(n * HW, HW)] = slab

        # One big MXU contraction instead of 9 K=3 dots.
        feat = jnp.dot(w1t_ref[...], pscr[...],
                       preferred_element_type=jnp.float32)
        feat = jnp.maximum(feat + b1_ref[...], 0.0)     # (cmid, Nb*HW)
        hm = jnp.dot(w2t_ref[...], feat,
                     preferred_element_type=jnp.float32) + b2_ref[...]

        # Lane-dense stores: one aligned 128-multiple lane slab per image.
        for n in range(Nb):
            hm_ref[n, :, :] = hm[:, n * HW:(n + 1) * HW]
            if return_feat:
                feat_ref[n, :, :] = feat[:, n * HW:(n + 1) * HW]

    return kernel


def pose_backbone(x_nchw, params, *, return_feat=False,
                  vmem_budget_bytes=10 * 1024 * 1024):
    """x_nchw: (N, C_in, H, W) f32 -> (hms (N, J, H, W), feat (N, C_mid, H, W)|None)."""
    w1, b1, w2, b2 = params["w1"], params["b1"], params["w2"], params["b2"]
    N, cin, H, W = x_nchw.shape
    cmid = w1.shape[1]
    nj = w2.shape[1]
    HW = H * W                      # standard heatmap sizes (16x16, 64x64) are
    cpad = _round_up(cin, 8)        # multiples of 128 -> fully lane-dense stores
    Lpad = _round_up((H + 2) * W + 2, 128)   # halo-padded flat length, lane aligned

    # Images per grid step: as many as fit a conservative VMEM budget (safe on
    # v5e/v6e/v7x default scoped VMEM), but keep >= 2 "parallel" steps when
    # N >= 2 so v7x's two TensorCores both get work.
    per_img_bytes = 4 * (2 * cin * Lpad              # input tile (double-buffered)
                         + 2 * nj * HW               # hm output tile (double-buffered)
                         + (2 * cmid * HW if return_feat else 0)
                         + 2 * 9 * cpad * HW         # patches scratch + its read
                         + cmid * HW + nj * HW)      # feat / hm intermediates
    nb_cap = max(1, vmem_budget_bytes // per_img_bytes)
    Nb = max(1, min(nb_cap, _cdiv(N, 2 if N >= 2 else 1)))
    n_steps = _cdiv(N, Nb)
    Npad = n_steps * Nb

    # Single pad pass: batch pad + top/bottom halo (W zeros each) + the 1-element
    # shift pad + lane alignment, all folded into one jnp.pad on the flat axis.
    xf = jnp.pad(x_nchw.reshape(N, cin, HW),
                 ((0, Npad - N), (0, 0), (W + 1, Lpad - HW - (W + 1))))

    # Conv weights: (9*cin, cmid) -> (cmid, 9*cpad); each tap's K slice is zero
    # padded from cin to cpad rows to match the 8-aligned scratch bands.
    w1_taps = jnp.pad(w1.reshape(9, cin, cmid), ((0, 0), (0, cpad - cin), (0, 0)))
    w1t = jnp.transpose(w1_taps, (2, 0, 1)).reshape(cmid, 9 * cpad)
    b1c = b1.reshape(cmid, 1)
    w2t = jnp.transpose(w2)                                      # (nj, cmid)
    b2c = b2.reshape(nj, 1)

    kernel = _make_backbone_kernel(H, W, HW, Nb, cin, cpad, cmid, nj, return_feat)

    out_shape = [jax.ShapeDtypeStruct((Npad, nj, HW), jnp.float32)]
    out_specs = [pl.BlockSpec((Nb, nj, HW), lambda s: (s, 0, 0))]
    if return_feat:
        out_shape.append(jax.ShapeDtypeStruct((Npad, cmid, HW), jnp.float32))
        out_specs.append(pl.BlockSpec((Nb, cmid, HW), lambda s: (s, 0, 0)))

    # NOTE: the constant-index weight/bias operands could be single-buffered
    # (pipeline_mode=pl.Buffered(1)); with only 1-2 grid steps the duplicated
    # ~5 KB is negligible, so the default is kept for robustness.
    outs = pl.pallas_call(
        kernel,
        out_shape=tuple(out_shape),
        grid=(n_steps,),
        in_specs=[
            pl.BlockSpec((Nb, cin, Lpad), lambda s: (s, 0, 0)),
            pl.BlockSpec((cmid, 9 * cpad), lambda s: (0, 0)),
            pl.BlockSpec((cmid, 1), lambda s: (0, 0)),
            pl.BlockSpec((nj, cmid), lambda s: (0, 0)),
            pl.BlockSpec((nj, 1), lambda s: (0, 0)),
        ],
        out_specs=tuple(out_specs),
        scratch_shapes=[pltpu.VMEM((9 * cpad, Nb * HW), jnp.float32)],
        compiler_params=pltpu.CompilerParams(
            dimension_semantics=("parallel",),
            vmem_limit_bytes=32 * 1024 * 1024),
    )(xf, w1t, b1c, w2t, b2c)

    hms = outs[0][:N].reshape(N, nj, H, W)                 # NCHW-flat: free reshape
    feat = outs[1][:N].reshape(N, cmid, H, W) if return_feat else None
    return hms, feat


# --------------------------------------------------------------------------- #
# IMU fusion blend (the `b_imu_fuse` branch of MultiViewPose.forward):
#   output_hms = fused_hms * 0.5 + origin_hms * (-0.5 * joint_channel_mask + 1.0)
# Flattened to (N*J, H*W) with lane-dense row tiles sized from a VMEM budget.
# --------------------------------------------------------------------------- #
def _imu_blend_kernel(fused_ref, origin_ref, scale_ref, out_ref):
    # scale_ref holds (-0.5 * joint_mask + 1.0) per row, broadcast over lanes.
    out_ref[...] = fused_ref[...] * 0.5 + origin_ref[...] * scale_ref[...]


def imu_fuse_blend(fused_hms, origin_hms, joint_channel_mask, *,
                   vmem_budget_bytes=8 * 1024 * 1024):
    """All heatmaps NCHW (N, J, H, W); mask broadcastable to (1, J, 1, 1)."""
    N, J, H, W = origin_hms.shape
    HW = H * W
    rows = N * J

    fused = fused_hms.reshape(rows, HW)
    origin = origin_hms.reshape(rows, HW)
    non_imu = -0.5 * jnp.asarray(joint_channel_mask, jnp.float32).reshape(J) + 1.0
    scale = jnp.broadcast_to(non_imu[None, :], (N, J)).reshape(rows, 1)

    # Row tile derived from a VMEM budget (2 inputs + 1 output, each
    # double-buffered, f32) — safe at production heatmap sizes on v5e's 16 MiB /
    # v6e-v7x's 32 MiB default scoped VMEM and v7x's 64 MiB physical VMEM,
    # while the big lane-dense tiles keep the kernel at the HBM roofline.
    # Keep >= 2 grid steps when possible so v7x's two TensorCores share work.
    bytes_per_row = 6 * HW * 4
    budget_rows = max(8, (vmem_budget_bytes // bytes_per_row) // 8 * 8)
    two_step_rows = _round_up(_cdiv(rows, 2), 8)
    rows_tile = max(8, min(budget_rows, two_step_rows))
    # TODO(synk): for extreme heatmap sizes where even 8 rows exceed the budget,
    # additionally tile the HW lane axis.
    rows_pad = _round_up(rows, rows_tile)
    if rows_pad != rows:
        pad = ((0, rows_pad - rows), (0, 0))
        fused = jnp.pad(fused, pad)
        origin = jnp.pad(origin, pad)
        scale = jnp.pad(scale, pad)

    out = pl.pallas_call(
        _imu_blend_kernel,
        out_shape=jax.ShapeDtypeStruct((rows_pad, HW), jnp.float32),
        grid=(rows_pad // rows_tile,),
        in_specs=[
            pl.BlockSpec((rows_tile, HW), lambda r: (r, 0)),
            pl.BlockSpec((rows_tile, HW), lambda r: (r, 0)),
            pl.BlockSpec((rows_tile, 1), lambda r: (r, 0)),
        ],
        out_specs=pl.BlockSpec((rows_tile, HW), lambda r: (r, 0)),
        compiler_params=pltpu.CompilerParams(
            dimension_semantics=("parallel",),
            vmem_limit_bytes=32 * 1024 * 1024),
    )(fused, origin, scale)
    return out[:rows].reshape(N, J, H, W)


# --------------------------------------------------------------------------- #
# MultiViewPose (JAX/Pallas version)
# --------------------------------------------------------------------------- #
class MultiViewPose:
    def __init__(self, backbone_params, cfg):
        self.config = cfg
        self.params = backbone_params
        self.b_in_view_fusion = cfg["CAM_FUSION_IN_VIEW_FUSION"]
        self.b_xview_self_fusion = cfg["CAM_FUSION_XVIEW_SELF_FUSION"]
        self.b_xview_fusion = cfg["CAM_FUSION_XVIEW_FUSION"]
        self.njoints = cfg["NUM_JOINTS"]
        self.h, self.w = cfg["HEATMAP_SIZE"]
        self.nview = len(cfg["SELECTED_VIEWS"])

        # register_buffer('joint_channel_mask', ...) — h36m/totalcapture IMU-related
        # heatmap channels.  Sized to the actual joint count so the blend never
        # shape-mismatches when NUM_JOINTS != 20.
        imu_related_joint_in_hm = [1, 2, 3, 4, 5, 6, 14, 15, 16, 17, 18, 19]
        idx = jnp.array([j for j in imu_related_joint_in_hm if j < self.njoints],
                        dtype=jnp.int32)
        mask = jnp.zeros((1, self.njoints, 1, 1), jnp.float32)
        mask = mask.at[0, idx, 0, 0].set(1.0)
        self.joint_channel_mask = mask

    @staticmethod
    def merge_first_two_dims(t):
        return t.reshape((t.shape[0] * t.shape[1],) + t.shape[2:])

    def forward(self, inputs, **kwargs):
        meta = {k: self.merge_first_two_dims(v) for k, v in kwargs.items()}
        del meta  # only consumed by the (external) CamFusionModule

        batch, nview = inputs.shape[0], inputs.shape[1]
        x = inputs.reshape((batch * nview,) + inputs.shape[2:])
        # feature_before_final is only needed by CamFusion; skip its compute/store
        # (and the second HBM output stream) whenever fusion is disabled.
        need_feat = self.b_in_view_fusion or self.b_xview_fusion
        hms, feature_before_final = pose_backbone(x, self.params,
                                                  return_feat=need_feat)
        del feature_before_final  # only the external CamFusionModule would use it

        extra = {"joint_channel_mask": self.joint_channel_mask, "origin_hms": hms}
        b_imu_fuse = False
        if self.b_in_view_fusion or self.b_xview_fusion:
            # TODO(synk): CamFusionModule (epipolar / IMU-bone cross-view heatmap
            # fusion over 100 logspace depth samples) is an external module whose
            # source is not provided; the geometric fusion is not reimplemented.
            # The blend that consumes its output is implemented in imu_fuse_blend.
            raise NotImplementedError("CamFusionModule not available")
        extra["imu_fuse"] = b_imu_fuse

        if b_imu_fuse:
            output_hms = imu_fuse_blend(extra["fused_hms"], extra["origin_hms"],
                                        self.joint_channel_mask)
        else:
            output_hms = extra["origin_hms"]
        return output_hms, extra


# --------------------------------------------------------------------------- #
# Plain-JAX reference (im2col formulation) for correctness checks.
# --------------------------------------------------------------------------- #
def _backbone_ref(x_nchw, params):
    x = jnp.transpose(x_nchw, (0, 2, 3, 1))
    N, H, W, _ = x.shape
    xp = jnp.pad(x, ((0, 0), (1, 1), (1, 1), (0, 0)))
    shifts = [xp[:, dy:dy + H, dx:dx + W, :] for dy in range(3) for dx in range(3)]
    patches = jnp.stack(shifts, axis=3).reshape(N * H * W, -1)
    feat = jnp.maximum(patches @ params["w1"] + params["b1"], 0.0)
    hm = feat @ params["w2"] + params["b2"]
    return jnp.transpose(hm.reshape(N, H, W, -1), (0, 3, 1, 2))


if __name__ == "__main__":
    key = jax.random.PRNGKey(0)
    batch, nview = 2, 4
    cin, cmid, njoints = 3, 32, 20
    H = W = 16

    k_w1, k_b1, k_w2, k_b2, k_x, k_f, k_cam = jax.random.split(key, 7)
    w1 = (jax.random.normal(k_w1, (3, 3, cin, cmid), jnp.float32) * 0.05
          ).reshape(9 * cin, cmid)
    b1 = jax.random.normal(k_b1, (1, cmid), jnp.float32) * 0.01
    w2 = jax.random.normal(k_w2, (cmid, njoints), jnp.float32) * 0.05
    b2 = jax.random.normal(k_b2, (1, njoints), jnp.float32) * 0.01
    params = {"w1": w1, "b1": b1, "w2": w2, "b2": b2}

    cfg = {
        "CAM_FUSION_IN_VIEW_FUSION": False,
        "CAM_FUSION_XVIEW_SELF_FUSION": False,
        "CAM_FUSION_XVIEW_FUSION": False,
        "NUM_JOINTS": njoints,
        "HEATMAP_SIZE": (H, W),
        "SELECTED_VIEWS": list(range(nview)),
    }
    model = MultiViewPose(params, cfg)

    inputs = jax.random.normal(k_x, (batch, nview, cin, H, W), jnp.float32)
    cam_kwargs = {
        "camera_R": jax.random.normal(k_cam, (batch, nview, 3, 3), jnp.float32),
        "camera_T": jnp.ones((batch, nview, 3, 1), jnp.float32),
        "camera_Intri": jnp.tile(jnp.eye(3, dtype=jnp.float32), (batch, nview, 1, 1)),
        "affine_trans": jnp.ones((batch, nview, 2, 3), jnp.float32),
        "inv_affine_trans": jnp.ones((batch, nview, 2, 3), jnp.float32),
        "bone_vectors_tensor": jnp.ones((batch, nview, 8, 3), jnp.float32),
    }

    output_hms, extra = model.forward(inputs, **cam_kwargs)
    output_hms = jax.block_until_ready(output_hms)
    assert output_hms.shape == (batch * nview, njoints, H, W)

    # Correctness of the backbone Pallas kernel vs. a plain-JAX reference.
    ref_hms = _backbone_ref(inputs.reshape(batch * nview, cin, H, W), params)
    assert jnp.allclose(output_hms, ref_hms, atol=1e-4, rtol=1e-4), (
        float(jnp.max(jnp.abs(output_hms - ref_hms))))

    # Also exercise the feat-producing variant once (interface parity with
    # PoseResNet returning (hms, feature_before_final)).
    hms2, feat2 = pose_backbone(inputs.reshape(batch * nview, cin, H, W),
                                params, return_feat=True)
    hms2, feat2 = jax.block_until_ready((hms2, feat2))
    assert feat2.shape == (batch * nview, cmid, H, W)
    assert jnp.allclose(hms2, ref_hms, atol=1e-4, rtol=1e-4)

    # Standalone check of the IMU-fusion blend kernel.  (The CamFusionModule that
    # would produce `fused_hms` is external; a synthetic tensor exercises only the
    # blend arithmetic of MultiViewPose.forward.)
    fused = jax.random.normal(k_f, output_hms.shape, jnp.float32)
    blended = jax.block_until_ready(
        imu_fuse_blend(fused, extra["origin_hms"], extra["joint_channel_mask"]))
    ref_blend = fused * 0.5 + extra["origin_hms"] * (
        -0.5 * extra["joint_channel_mask"][0] + 1.0)
    assert jnp.allclose(blended, ref_blend, atol=1e-5, rtol=1e-5)

    print("KERNEL_OK")
</pallas_src>

<mosaic_0001>
module attributes {stable_mosaic.version = 11 : i64} {
  func.func @kernel(%arg0: i32, %arg1: memref<4x3x384xf32, #tpu.memory_space<vmem>>, %arg2: memref<32x72xf32, #tpu.memory_space<vmem>>, %arg3: memref<32x1xf32, #tpu.memory_space<vmem>>, %arg4: memref<20x32xf32, #tpu.memory_space<vmem>>, %arg5: memref<20x1xf32, #tpu.memory_space<vmem>>, %arg6: memref<4x20x256xf32, #tpu.memory_space<vmem>>, %arg7: memref<72x1024xf32, #tpu.memory_space<vmem>>) attributes {dimension_semantics = [#tpu.dimension_semantics<parallel>], iteration_bounds = array<i64: 2>, scalar_prefetch = 0 : i64, scratch_operands = 1 : i64, tpu.core_type = #tpu.core_type<tc>, window_params = [{transform_indices = @transform_0, window_bounds = array<i64: 4, 3, 384>}, {pipeline_mode = #tpu.pipeline_mode<synchronous>, transform_indices = @transform_1, window_bounds = array<i64: 32, 72>}, {pipeline_mode = #tpu.pipeline_mode<synchronous>, transform_indices = @transform_2, window_bounds = array<i64: 32, 1>}, {pipeline_mode = #tpu.pipeline_mode<synchronous>, transform_indices = @transform_3, window_bounds = array<i64: 20, 32>}, {pipeline_mode = #tpu.pipeline_mode<synchronous>, transform_indices = @transform_4, window_bounds = array<i64: 20, 1>}, {transform_indices = @transform_5, window_bounds = array<i64: 4, 20, 256>}]} {
    %cst = arith.constant 0.000000e+00 : f32
    %0 = vector.broadcast %cst : f32 to vector<72x1024xf32>
    %c0 = arith.constant 0 : index
    %c0_0 = arith.constant 0 : index
    %1 = vector.load %arg7[%c0, %c0_0] : memref<72x1024xf32, #tpu.memory_space<vmem>>, vector<72x1024xf32>
    tpu.vector_store %arg7[%c0, %c0_0], %0 {strides = array<i32>} : memref<72x1024xf32, #tpu.memory_space<vmem>>, vector<72x1024xf32>,
    %2 = tpu.iota {dimensions = array<i32: 1>} : vector<1x256xi32>
    %c16_i32 = arith.constant 16 : i32
    %c0_i32 = arith.constant 0 : i32
    %3 = arith.cmpi eq, %c16_i32, %c0_i32 : i32
    %c1_i32 = arith.constant 1 : i32
    %4 = arith.select %3, %c1_i32, %c16_i32 : i32
    %5 = vector.broadcast %4 : i32 to vector<1x256xi32>
    %6 = arith.remsi %2, %5 : vector<1x256xi32>
    %c0_i32_1 = arith.constant 0 : i32
    %7 = vector.broadcast %c0_i32_1 : i32 to vector<1x256xi32>
    %8 = arith.cmpi ne, %6, %7 : vector<1x256xi32>
    %c0_i32_2 = arith.constant 0 : i32
    %9 = vector.broadcast %c0_i32_2 : i32 to vector<1x256xi32>
    %10 = arith.cmpi slt, %6, %9 : vector<1x256xi32>
    %c0_i32_3 = arith.constant 0 : i32
    %11 = arith.cmpi slt, %4, %c0_i32_3 : i32
    %12 = vector.broadcast %11 : i1 to vector<1x256xi1>
    %13 = vector.broadcast %12 : vector<1x256xi1> to vector<1x256xi1>
    %14 = arith.xori %10, %13 : vector<1x256xi1>
    %15 = arith.andi %14, %8 : vector<1x256xi1>
    %16 = vector.broadcast %4 : i32 to vector<1x256xi32>
    %17 = arith.addi %6, %16 : vector<1x256xi32>
    %18 = arith.select %15, %17, %6 : vector<1x256xi1>, vector<1x256xi32>
    %c0_i32_4 = arith.constant 0 : i32
    %19 = vector.broadcast %c0_i32_4 : i32 to vector<1x256xi32>
    %20 = arith.cmpi ne, %18, %19 : vector<1x256xi32>
    %c15_i32 = arith.constant 15 : i32
    %21 = vector.broadcast %c15_i32 : i32 to vector<1x256xi32>
    %22 = arith.cmpi ne, %18, %21 : vector<1x256xi32>
    %c0_5 = arith.constant 0 : index
    %c0_6 = arith.constant 0 : index
    %c0_7 = arith.constant 0 : index
    %23 = vector.load %arg1[%c0_5, %c0_6, %c0_7] : memref<4x3x384xf32, #tpu.memory_space<vmem>>, vector<1x3x256xf32>
    %24 = vector.shape_cast %23 : vector<1x3x256xf32> to vector<3x256xf32>
    %cst_8 = arith.constant 0.000000e+00 : f32
    %25 = vector.shape_cast %20 : vector<1x256xi1> to vector<1x256xi1>
    %26 = vector.broadcast %25 : vector<1x256xi1> to vector<3x256xi1>
    %27 = vector.broadcast %cst_8 : f32 to vector<3x256xf32>
    %28 = arith.select %26, %24, %27 : vector<3x256xi1>, vector<3x256xf32>
    %c0_9 = arith.constant 0 : index
    %c0_10 = arith.constant 0 : index
    %29 = vector.load %arg7[%c0_9, %c0_10] : memref<72x1024xf32, #tpu.memory_space<vmem>>, vector<3x256xf32>
    tpu.vector_store %arg7[%c0_9, %c0_10], %28 {strides = array<i32>} : memref<72x1024xf32, #tpu.memory_space<vmem>>, vector<3x256xf32>,
    %c1 = arith.constant 1 : index
    %c0_11 = arith.constant 0 : index
    %c0_12 = arith.constant 0 : index
    %30 = vector.load %arg1[%c1, %c0_11, %c0_12] : memref<4x3x384xf32, #tpu.memory_space<vmem>>, vector<1x3x256xf32>
    %31 = vector.shape_cast %30 : vector<1x3x256xf32> to vector<3x256xf32>
    %cst_13 = arith.constant 0.000000e+00 : f32
    %32 = vector.shape_cast %20 : vector<1x256xi1> to vector<1x256xi1>
    %33 = vector.broadcast %32 : vector<1x256xi1> to vector<3x256xi1>
    %34 = vector.broadcast %cst_13 : f32 to vector<3x256xf32>
    %35 = arith.select %33, %31, %34 : vector<3x256xi1>, vector<3x256xf32>
    %c0_14 = arith.constant 0 : index
    %c256 = arith.constant 256 : index
    %36 = vector.load %arg7[%c0_14, %c256] : memref<72x1024xf32, #tpu.memory_space<vmem>>, vector<3x256xf32>
    tpu.vector_store %arg7[%c0_14, %c256], %35 {strides = array<i32>} : memref<72x1024xf32, #tpu.memory_space<vmem>>, vector<3x256xf32>,
    %c2 = arith.constant 2 : index
    %c0_15 = arith.constant 0 : index
    %c0_16 = arith.constant 0 : index
    %37 = vector.load %arg1[%c2, %c0_15, %c0_16] : memref<4x3x384xf32, #tpu.memory_space<vmem>>, vector<1x3x256xf32>
    %38 = vector.shape_cast %37 : vector<1x3x256xf32> to vector<3x256xf32>
    %cst_17 = arith.constant 0.000000e+00 : f32
    %39 = vector.shape_cast %20 : vector<1x256xi1> to vector<1x256xi1>
    %40 = vector.broadcast %39 : vector<1x256xi1> to vector<3x256xi1>
    %41 = vector.broadcast %cst_17 : f32 to vector<3x256xf32>
    %42 = arith.select %40, %38, %41 : vector<3x256xi1>, vector<3x256xf32>
    %c0_18 = arith.constant 0 : index
    %c512 = arith.constant 512 : index
    %43 = vector.load %arg7[%c0_18, %c512] : memref<72x1024xf32, #tpu.memory_space<vmem>>, vector<3x256xf32>
    tpu.vector_store %arg7[%c0_18, %c512], %42 {strides = array<i32>} : memref<72x1024xf32, #tpu.memory_space<vmem>>, vector<3x256xf32>,
    %c3 = arith.constant 3 : index
    %c0_19 = arith.constant 0 : index
    %c0_20 = arith.constant 0 : index
    %44 = vector.load %arg1[%c3, %c0_19, %c0_20] : memref<4x3x384xf32, #tpu.memory_space<vmem>>, vector<1x3x256xf32>
    %45 = vector.shape_cast %44 : vector<1x3x256xf32> to vector<3x256xf32>
    %cst_21 = arith.constant 0.000000e+00 : f32
    %46 = vector.shape_cast %20 : vector<1x256xi1> to vector<1x256xi1>
    %47 = vector.broadcast %46 : vector<1x256xi1> to vector<3x256xi1>
    %48 = vector.broadcast %cst_21 : f32 to vector<3x256xf32>
    %49 = arith.select %47, %45, %48 : vector<3x256xi1>, vector<3x256xf32>
    %c0_22 = arith.constant 0 : index
    %c768 = arith.constant 768 : index
    %50 = vector.load %arg7[%c0_22, %c768] : memref<72x1024xf32, #tpu.memory_space<vmem>>, vector<3x256xf32>
    tpu.vector_store %arg7[%c0_22, %c768], %49 {strides = array<i32>} : memref<72x1024xf32, #tpu.memory_space<vmem>>, vector<3x256xf32>,
    %c0_23 = arith.constant 0 : index
    %c0_24 = arith.constant 0 : index
    %c1_25 = arith.constant 1 : index
    %51 = vector.load %arg1[%c0_23, %c0_24, %c1_25] : memref<4x3x384xf32, #tpu.memory_space<vmem>>, vector<1x3x256xf32>
    %52 = vector.shape_cast %51 : vector<1x3x256xf32> to vector<3x256xf32>
    %c8 = arith.constant 8 : index
    %c0_26 = arith.constant 0 : index
    %53 = vector.load %arg7[%c8, %c0_26] : memref<72x1024xf32, #tpu.memory_space<vmem>>, vector<3x256xf32>
    tpu.vector_store %arg7[%c8, %c0_26], %52 {strides = array<i32>} : memref<72x1024xf32, #tpu.memory_space<vmem>>, vector<3x256xf32>,
    %c1_27 = arith.constant 1 : index
    %c0_28 = arith.constant 0 : index
    %c1_29 = arith.constant 1 : index
    %54 = vector.load %arg1[%c1_27, %c0_28, %c1_29] : memref<4x3x384xf32, #tpu.memory_space<vmem>>, vector<1x3x256xf32>
    %55 = vector.shape_cast %54 : vector<1x3x256xf32> to vector<3x256xf32>
    %c8_30 = arith.constant 8 : index
    %c256_31 = arith.constant 256 : index
    %56 = vector.load %arg7[%c8_30, %c256_31] : memref<72x1024xf32, #tpu.memory_space<vmem>>, vector<3x256xf32>
    tpu.vector_store %arg7[%c8_30, %c256_31], %55 {strides = array<i32>} : memref<72x1024xf32, #tpu.memory_space<vmem>>, vector<3x256xf32>,
    %c2_32 = arith.constant 2 : index
    %c0_33 = arith.constant 0 : index
    %c1_34 = arith.constant 1 : index
    %57 = vector.load %arg1[%c2_32, %c0_33, %c1_34] : memref<4x3x384xf32, #tpu.memory_space<vmem>>, vector<1x3x256xf32>
    %58 = vector.shape_cast %57 : vector<1x3x256xf32> to vector<3x256xf32>
    %c8_35 = arith.constant 8 : index
    %c512_36 = arith.constant 512 : index
    %59 = vector.load %arg7[%c8_35, %c512_36] : memref<72x1024xf32, #tpu.memory_space<vmem>>, vector<3x256xf32>
    tpu.vector_store %arg7[%c8_35, %c512_36], %58 {strides = array<i32>} : memref<72x1024xf32, #tpu.memory_space<vmem>>, vector<3x256xf32>,
    %c3_37 = arith.constant 3 : index
    %c0_38 = arith.constant 0 : index
    %c1_39 = arith.constant 1 : index
    %60 = vector.load %arg1[%c3_37, %c0_38, %c1_39] : memref<4x3x384xf32, #tpu.memory_space<vmem>>, vector<1x3x256xf32>
    %61 = vector.shape_cast %60 : vector<1x3x256xf32> to vector<3x256xf32>
    %c8_40 = arith.constant 8 : index
    %c768_41 = arith.constant 768 : index
    %62 = vector.load %arg7[%c8_40, %c768_41] : memref<72x1024xf32, #tpu.memory_space<vmem>>, vector<3x256xf32>
    tpu.vector_store %arg7[%c8_40, %c768_41], %61 {strides = array<i32>} : memref<72x1024xf32, #tpu.memory_space<vmem>>, vector<3x256xf32>,
    %c0_42 = arith.constant 0 : index
    %c0_43 = arith.constant 0 : index
    %c2_44 = arith.constant 2 : index
    %63 = vector.load %arg1[%c0_42, %c0_43, %c2_44] : memref<4x3x384xf32, #tpu.memory_space<vmem>>, vector<1x3x256xf32>
    %64 = vector.shape_cast %63 : vector<1x3x256xf32> to vector<3x256xf32>
    %cst_45 = arith.constant 0.000000e+00 : f32
    %65 = vector.shape_cast %22 : vector<1x256xi1> to vector<1x256xi1>
    %66 = vector.broadcast %65 : vector<1x256xi1> to vector<3x256xi1>
    %67 = vector.broadcast %cst_45 : f32 to vector<3x256xf32>
    %68 = arith.select %66, %64, %67 : vector<3x256xi1>, vector<3x256xf32>
    %c16 = arith.constant 16 : index
    %c0_46 = arith.constant 0 : index
    %69 = vector.load %arg7[%c16, %c0_46] : memref<72x1024xf32, #tpu.memory_space<vmem>>, vector<3x256xf32>
    tpu.vector_store %arg7[%c16, %c0_46], %68 {strides = array<i32>} : memref<72x1024xf32, #tpu.memory_space<vmem>>, vector<3x256xf32>,
    %c1_47 = arith.constant 1 : index
    %c0_48 = arith.constant 0 : index
    %c2_49 = arith.constant 2 : index
    %70 = vector.load %arg1[%c1_47, %c0_48, %c2_49] : memref<4x3x384xf32, #tpu.memory_space<vmem>>, vector<1x3x256xf32>
    %71 = vector.shape_cast %70 : vector<1x3x256xf32> to vector<3x256xf32>
    %cst_50 = arith.constant 0.000000e+00 : f32
    %72 = vector.shape_cast %22 : vector<1x256xi1> to vector<1x256xi1>
    %73 = vector.broadcast %72 : vector<1x256xi1> to vector<3x256xi1>
    %74 = vector.broadcast %cst_50 : f32 to vector<3x256xf32>
    %75 = arith.select %73, %71, %74 : vector<3x256xi1>, vector<3x256xf32>
    %c16_51 = arith.constant 16 : index
    %c256_52 = arith.constant 256 : index
    %76 = vector.load %arg7[%c16_51, %c256_52] : memref<72x1024xf32, #tpu.memory_space<vmem>>, vector<3x256xf32>
    tpu.vector_store %arg7[%c16_51, %c256_52], %75 {strides = array<i32>} : memref<72x1024xf32, #tpu.memory_space<vmem>>, vector<3x256xf32>,
    %c2_53 = arith.constant 2 : index
    %c0_54 = arith.constant 0 : index
    %c2_55 = arith.constant 2 : index
    %77 = vector.load %arg1[%c2_53, %c0_54, %c2_55] : memref<4x3x384xf32, #tpu.memory_space<vmem>>, vector<1x3x256xf32>
    %78 = vector.shape_cast %77 : vector<1x3x256xf32> to vector<3x256xf32>
    %cst_56 = arith.constant 0.000000e+00 : f32
    %79 = vector.shape_cast %22 : vector<1x256xi1> to vector<1x256xi1>
    %80 = vector.broadcast %79 : vector<1x256xi1> to vector<3x256xi1>
    %81 = vector.broadcast %cst_56 : f32 to vector<3x256xf32>
    %82 = arith.select %80, %78, %81 : vector<3x256xi1>, vector<3x256xf32>
    %c16_57 = arith.constant 16 : index
    %c512_58 = arith.constant 512 : index
    %83 = vector.load %arg7[%c16_57, %c512_58] : memref<72x1024xf32, #tpu.memory_space<vmem>>, vector<3x256xf32>
    tpu.vector_store %arg7[%c16_57, %c512_58], %82 {strides = array<i32>} : memref<72x1024xf32, #tpu.memory_space<vmem>>, vector<3x256xf32>,
    %c3_59 = arith.constant 3 : index
    %c0_60 = arith.constant 0 : index
    %c2_61 = arith.constant 2 : index
    %84 = vector.load %arg1[%c3_59, %c0_60, %c2_61] : memref<4x3x384xf32, #tpu.memory_space<vmem>>, vector<1x3x256xf32>
    %85 = vector.shape_cast %84 : vector<1x3x256xf32> to vector<3x256xf32>
    %cst_62 = arith.constant 0.000000e+00 : f32
    %86 = vector.shape_cast %22 : vector<1x256xi1> to vector<1x256xi1>
    %87 = vector.broadcast %86 : vector<1x256xi1> to vector<3x256xi1>
    %88 = vector.broadcast %cst_62 : f32 to vector<3x256xf32>
    %89 = arith.select %87, %85, %88 : vector<3x256xi1>, vector<3x256xf32>
    %c16_63 = arith.constant 16 : index
    %c768_64 = arith.constant 768 : index
    %90 = vector.load %arg7[%c16_63, %c768_64] : memref<72x1024xf32, #tpu.memory_space<vmem>>, vector<3x256xf32>
    tpu.vector_store %arg7[%c16_63, %c768_64], %89 {strides = array<i32>} : memref<72x1024xf32, #tpu.memory_space<vmem>>, vector<3x256xf32>,
    %c0_65 = arith.constant 0 : index
    %c0_66 = arith.constant 0 : index
    %c16_67 = arith.constant 16 : index
    %91 = vector.load %arg1[%c0_65, %c0_66, %c16_67] : memref<4x3x384xf32, #tpu.memory_space<vmem>>, vector<1x3x256xf32>
    %92 = vector.shape_cast %91 : vector<1x3x256xf32> to vector<3x256xf32>
    %cst_68 = arith.constant 0.000000e+00 : f32
    %93 = vector.shape_cast %20 : vector<1x256xi1> to vector<1x256xi1>
    %94 = vector.broadcast %93 : vector<1x256xi1> to vector<3x256xi1>
    %95 = vector.broadcast %cst_68 : f32 to vector<3x256xf32>
    %96 = arith.select %94, %92, %95 : vector<3x256xi1>, vector<3x256xf32>
    %c24 = arith.constant 24 : index
    %c0_69 = arith.constant 0 : index
    %97 = vector.load %arg7[%c24, %c0_69] : memref<72x1024xf32, #tpu.memory_space<vmem>>, vector<3x256xf32>
    tpu.vector_store %arg7[%c24, %c0_69], %96 {strides = array<i32>} : memref<72x1024xf32, #tpu.memory_space<vmem>>, vector<3x256xf32>,
    %c1_70 = arith.constant 1 : index
    %c0_71 = arith.constant 0 : index
    %c16_72 = arith.constant 16 : index
    %98 = vector.load %arg1[%c1_70, %c0_71, %c16_72] : memref<4x3x384xf32, #tpu.memory_space<vmem>>, vector<1x3x256xf32>
    %99 = vector.shape_cast %98 : vector<1x3x256xf32> to vector<3x256xf32>
    %cst_73 = arith.constant 0.000000e+00 : f32
    %100 = vector.shape_cast %20 : vector<1x256xi1> to vector<1x256xi1>
    %101 = vector.broadcast %100 : vector<1x256xi1> to vector<3x256xi1>
    %102 = vector.broadcast %cst_73 : f32 to vector<3x256xf32>
    %103 = arith.select %101, %99, %102 : vector<3x256xi1>, vector<3x256xf32>
    %c24_74 = arith.constant 24 : index
    %c256_75 = arith.constant 256 : index
    %104 = vector.load %arg7[%c24_74, %c256_75] : memref<72x1024xf32, #tpu.memory_space<vmem>>, vector<3x256xf32>
    tpu.vector_store %arg7[%c24_74, %c256_75], %103 {strides = array<i32>} : memref<72x1024xf32, #tpu.memory_space<vmem>>, vector<3x256xf32>,
    %c2_76 = arith.constant 2 : index
    %c0_77 = arith.constant 0 : index
    %c16_78 = arith.constant 16 : index
    %105 = vector.load %arg1[%c2_76, %c0_77, %c16_78] : memref<4x3x384xf32, #tpu.memory_space<vmem>>, vector<1x3x256xf32>
    %106 = vector.shape_cast %105 : vector<1x3x256xf32> to vector<3x256xf32>
    %cst_79 = arith.constant 0.000000e+00 : f32
    %107 = vector.shape_cast %20 : vector<1x256xi1> to vector<1x256xi1>
    %108 = vector.broadcast %107 : vector<1x256xi1> to vector<3x256xi1>
    %109 = vector.broadcast %cst_79 : f32 to vector<3x256xf32>
    %110 = arith.select %108, %106, %109 : vector<3x256xi1>, vector<3x256xf32>
    %c24_80 = arith.constant 24 : index
    %c512_81 = arith.constant 512 : index
    %111 = vector.load %arg7[%c24_80, %c512_81] : memref<72x1024xf32, #tpu.memory_space<vmem>>, vector<3x256xf32>
    tpu.vector_store %arg7[%c24_80, %c512_81], %110 {strides = array<i32>} : memref<72x1024xf32, #tpu.memory_space<vmem>>, vector<3x256xf32>,
    %c3_82 = arith.constant 3 : index
    %c0_83 = arith.constant 0 : index
    %c16_84 = arith.constant 16 : index
    %112 = vector.load %arg1[%c3_82, %c0_83, %c16_84] : memref<4x3x384xf32, #tpu.memory_space<vmem>>, vector<1x3x256xf32>
    %113 = vector.shape_cast %112 : vector<1x3x256xf32> to vector<3x256xf32>
    %cst_85 = arith.constant 0.000000e+00 : f32
    %114 = vector.shape_cast %20 : vector<1x256xi1> to vector<1x256xi1>
    %115 = vector.broadcast %114 : vector<1x256xi1> to vector<3x256xi1>
    %116 = vector.broadcast %cst_85 : f32 to vector<3x256xf32>
    %117 = arith.select %115, %113, %116 : vector<3x256xi1>, vector<3x256xf32>
    %c24_86 = arith.constant 24 : index
    %c768_87 = arith.constant 768 : index
    %118 = vector.load %arg7[%c24_86, %c768_87] : memref<72x1024xf32, #tpu.memory_space<vmem>>, vector<3x256xf32>
    tpu.vector_store %arg7[%c24_86, %c768_87], %117 {strides = array<i32>} : memref<72x1024xf32, #tpu.memory_space<vmem>>, vector<3x256xf32>,
    %c0_88 = arith.constant 0 : index
    %c0_89 = arith.constant 0 : index
    %c17 = arith.constant 17 : index
    %119 = vector.load %arg1[%c0_88, %c0_89, %c17] : memref<4x3x384xf32, #tpu.memory_space<vmem>>, vector<1x3x256xf32>
    %120 = vector.shape_cast %119 : vector<1x3x256xf32> to vector<3x256xf32>
    %c32 = arith.constant 32 : index
    %c0_90 = arith.constant 0 : index
    %121 = vector.load %arg7[%c32, %c0_90] : memref<72x1024xf32, #tpu.memory_space<vmem>>, vector<3x256xf32>
    tpu.vector_store %arg7[%c32, %c0_90], %120 {strides = array<i32>} : memref<72x1024xf32, #tpu.memory_space<vmem>>, vector<3x256xf32>,
    %c1_91 = arith.constant 1 : index
    %c0_92 = arith.constant 0 : index
    %c17_93 = arith.constant 17 : index
    %122 = vector.load %arg1[%c1_91, %c0_92, %c17_93] : memref<4x3x384xf32, #tpu.memory_space<vmem>>, vector<1x3x256xf32>
    %123 = vector.shape_cast %122 : vector<1x3x256xf32> to vector<3x256xf32>
    %c32_94 = arith.constant 32 : index
    %c256_95 = arith.constant 256 : index
    %124 = vector.load %arg7[%c32_94, %c256_95] : memref<72x1024xf32, #tpu.memory_space<vmem>>, vector<3x256xf32>
    tpu.vector_store %arg7[%c32_94, %c256_95], %123 {strides = array<i32>} : memref<72x1024xf32, #tpu.memory_space<vmem>>, vector<3x256xf32>,
    %c2_96 = arith.constant 2 : index
    %c0_97 = arith.constant 0 : index
    %c17_98 = arith.constant 17 : index
    %125 = vector.load %arg1[%c2_96, %c0_97, %c17_98] : memref<4x3x384xf32, #tpu.memory_space<vmem>>, vector<1x3x256xf32>
    %126 = vector.shape_cast %125 : vector<1x3x256xf32> to vector<3x256xf32>
    %c32_99 = arith.constant 32 : index
    %c512_100 = arith.constant 512 : index
    %127 = vector.load %arg7[%c32_99, %c512_100] : memref<72x1024xf32, #tpu.memory_space<vmem>>, vector<3x256xf32>
    tpu.vector_store %arg7[%c32_99, %c512_100], %126 {strides = array<i32>} : memref<72x1024xf32, #tpu.memory_space<vmem>>, vector<3x256xf32>,
    %c3_101 = arith.constant 3 : index
    %c0_102 = arith.constant 0 : index
    %c17_103 = arith.constant 17 : index
    %128 = vector.load %arg1[%c3_101, %c0_102, %c17_103] : memref<4x3x384xf32, #tpu.memory_space<vmem>>, vector<1x3x256xf32>
    %129 = vector.shape_cast %128 : vector<1x3x256xf32> to vector<3x256xf32>
    %c32_104 = arith.constant 32 : index
    %c768_105 = arith.constant 768 : index
    %130 = vector.load %arg7[%c32_104, %c768_105] : memref<72x1024xf32, #tpu.memory_space<vmem>>, vector<3x256xf32>
    tpu.vector_store %arg7[%c32_104, %c768_105], %129 {strides = array<i32>} : memref<72x1024xf32, #tpu.memory_space<vmem>>, vector<3x256xf32>,
    %c0_106 = arith.constant 0 : index
    %c0_107 = arith.constant 0 : index
    %c18 = arith.constant 18 : index
    %131 = vector.load %arg1[%c0_106, %c0_107, %c18] : memref<4x3x384xf32, #tpu.memory_space<vmem>>, vector<1x3x256xf32>
    %132 = vector.shape_cast %131 : vector<1x3x256xf32> to vector<3x256xf32>
    %cst_108 = arith.constant 0.000000e+00 : f32
    %133 = vector.shape_cast %22 : vector<1x256xi1> to vector<1x256xi1>
    %134 = vector.broadcast %133 : vector<1x256xi1> to vector<3x256xi1>
    %135 = vector.broadcast %cst_108 : f32 to vector<3x256xf32>
    %136 = arith.select %134, %132, %135 : vector<3x256xi1>, vector<3x256xf32>
    %c40 = arith.constant 40 : index
    %c0_109 = arith.constant 0 : index
    %137 = vector.load %arg7[%c40, %c0_109] : memref<72x1024xf32, #tpu.memory_space<vmem>>, vector<3x256xf32>
    tpu.vector_store %arg7[%c40, %c0_109], %136 {strides = array<i32>} : memref<72x1024xf32, #tpu.memory_space<vmem>>, vector<3x256xf32>,
    %c1_110 = arith.constant 1 : index
    %c0_111 = arith.constant 0 : index
    %c18_112 = arith.constant 18 : index
    %138 = vector.load %arg1[%c1_110, %c0_111, %c18_112] : memref<4x3x384xf32, #tpu.memory_space<vmem>>, vector<1x3x256xf32>
    %139 = vector.shape_cast %138 : vector<1x3x256xf32> to vector<3x256xf32>
    %cst_113 = arith.constant 0.000000e+00 : f32
    %140 = vector.shape_cast %22 : vector<1x256xi1> to vector<1x256xi1>
    %141 = vector.broadcast %140 : vector<1x256xi1> to vector<3x256xi1>
    %142 = vector.broadcast %cst_113 : f32 to vector<3x256xf32>
    %143 = arith.select %141, %139, %142 : vector<3x256xi1>, vector<3x256xf32>
    %c40_114 = arith.constant 40 : index
    %c256_115 = arith.constant 256 : index
    %144 = vector.load %arg7[%c40_114, %c256_115] : memref<72x1024xf32, #tpu.memory_space<vmem>>, vector<3x256xf32>
    tpu.vector_store %arg7[%c40_114, %c256_115], %143 {strides = array<i32>} : memref<72x1024xf32, #tpu.memory_space<vmem>>, vector<3x256xf32>,
    %c2_116 = arith.constant 2 : index
    %c0_117 = arith.constant 0 : index
    %c18_118 = arith.constant 18 : index
    %145 = vector.load %arg1[%c2_116, %c0_117, %c18_118] : memref<4x3x384xf32, #tpu.memory_space<vmem>>, vector<1x3x256xf32>
    %146 = vector.shape_cast %145 : vector<1x3x256xf32> to vector<3x256xf32>
    %cst_119 = arith.constant 0.000000e+00 : f32
    %147 = vector.shape_cast %22 : vector<1x256xi1> to vector<1x256xi1>
    %148 = vector.broadcast %147 : vector<1x256xi1> to vector<3x256xi1>
    %149 = vector.broadcast %cst_119 : f32 to vector<3x256xf32>
    %150 = arith.select %148, %146, %149 : vector<3x256xi1>, vector<3x256xf32>
    %c40_120 = arith.constant 40 : index
    %c512_121 = arith.constant 512 : index
    %151 = vector.load %arg7[%c40_120, %c512_121] : memref<72x1024xf32, #tpu.memory_space<vmem>>, vector<3x256xf32>
    tpu.vector_store %arg7[%c40_120, %c512_121], %150 {strides = array<i32>} : memref<72x1024xf32, #tpu.memory_space<vmem>>, vector<3x256xf32>,
    %c3_122 = arith.constant 3 : index
    %c0_123 = arith.constant 0 : index
    %c18_124 = arith.constant 18 : index
    %152 = vector.load %arg1[%c3_122, %c0_123, %c18_124] : memref<4x3x384xf32, #tpu.memory_space<vmem>>, vector<1x3x256xf32>
    %153 = vector.shape_cast %152 : vector<1x3x256xf32> to vector<3x256xf32>
    %cst_125 = arith.constant 0.000000e+00 : f32
    %154 = vector.shape_cast %22 : vector<1x256xi1> to vector<1x256xi1>
    %155 = vector.broadcast %154 : vector<1x256xi1> to vector<3x256xi1>
    %156 = vector.broadcast %cst_125 : f32 to vector<3x256xf32>
    %157 = arith.select %155, %153, %156 : vector<3x256xi1>, vector<3x256xf32>
    %c40_126 = arith.constant 40 : index
    %c768_127 = arith.constant 768 : index
    %158 = vector.load %arg7[%c40_126, %c768_127] : memref<72x1024xf32, #tpu.memory_space<vmem>>, vector<3x256xf32>
    tpu.vector_store %arg7[%c40_126, %c768_127], %157 {strides = array<i32>} : memref<72x1024xf32, #tpu.memory_space<vmem>>, vector<3x256xf32>,
    %c0_128 = arith.constant 0 : index
    %c0_129 = arith.constant 0 : index
    %c32_130 = arith.constant 32 : index
    %159 = vector.load %arg1[%c0_128, %c0_129, %c32_130] : memref<4x3x384xf32, #tpu.memory_space<vmem>>, vector<1x3x256xf32>
    %160 = vector.shape_cast %159 : vector<1x3x256xf32> to vector<3x256xf32>
    %cst_131 = arith.constant 0.000000e+00 : f32
    %161 = vector.shape_cast %20 : vector<1x256xi1> to vector<1x256xi1>
    %162 = vector.broadcast %161 : vector<1x256xi1> to vector<3x256xi1>
    %163 = vector.broadcast %cst_131 : f32 to vector<3x256xf32>
    %164 = arith.select %162, %160, %163 : vector<3x256xi1>, vector<3x256xf32>
    %c48 = arith.constant 48 : index
    %c0_132 = arith.constant 0 : index
    %165 = vector.load %arg7[%c48, %c0_132] : memref<72x1024xf32, #tpu.memory_space<vmem>>, vector<3x256xf32>
    tpu.vector_store %arg7[%c48, %c0_132], %164 {strides = array<i32>} : memref<72x1024xf32, #tpu.memory_space<vmem>>, vector<3x256xf32>,
    %c1_133 = arith.constant 1 : index
    %c0_134 = arith.constant 0 : index
    %c32_135 = arith.constant 32 : index
    %166 = vector.load %arg1[%c1_133, %c0_134, %c32_135] : memref<4x3x384xf32, #tpu.memory_space<vmem>>, vector<1x3x256xf32>
    %167 = vector.shape_cast %166 : vector<1x3x256xf32> to vector<3x256xf32>
    %cst_136 = arith.constant 0.000000e+00 : f32
    %168 = vector.shape_cast %20 : vector<1x256xi1> to vector<1x256xi1>
    %169 = vector.broadcast %168 : vector<1x256xi1> to vector<3x256xi1>
    %170 = vector.broadcast %cst_136 : f32 to vector<3x256xf32>
    %171 = arith.select %169, %167, %170 : vector<3x256xi1>, vector<3x256xf32>
    %c48_137 = arith.constant 48 : index
    %c256_138 = arith.constant 256 : index
    %172 = vector.load %arg7[%c48_137, %c256_138] : memref<72x1024xf32, #tpu.memory_space<vmem>>, vector<3x256xf32>
    tpu.vector_store %arg7[%c48_137, %c256_138], %171 {strides = array<i32>} : memref<72x1024xf32, #tpu.memory_space<vmem>>, vector<3x256xf32>,
    %c2_139 = arith.constant 2 : index
    %c0_140 = arith.constant 0 : index
    %c32_141 = arith.constant 32 : index
    %173 = vector.load %arg1[%c2_139, %c0_140, %c32_141] : memref<4x3x384xf32, #tpu.memory_space<vmem>>, vector<1x3x256xf32>
    %174 = vector.shape_cast %173 : vector<1x3x256xf32> to vector<3x256xf32>
    %cst_142 = arith.constant 0.000000e+00 : f32
    %175 = vector.shape_cast %20 : vector<1x256xi1> to vector<1x256xi1>
    %176 = vector.broadcast %175 : vector<1x256xi1> to vector<3x256xi1>
    %177 = vector.broadcast %cst_142 : f32 to vector<3x256xf32>
    %178 = arith.select %176, %174, %177 : vector<3x256xi1>, vector<3x256xf32>
    %c48_143 = arith.constant 48 : index
    %c512_144 = arith.constant 512 : index
    %179 = vector.load %arg7[%c48_143, %c512_144] : memref<72x1024xf32, #tpu.memory_space<vmem>>, vector<3x256xf32>
    tpu.vector_store %arg7[%c48_143, %c512_144], %178 {strides = array<i32>} : memref<72x1024xf32, #tpu.memory_space<vmem>>, vector<3x256xf32>,
    %c3_145 = arith.constant 3 : index
    %c0_146 = arith.constant 0 : index
    %c32_147 = arith.constant 32 : index
    %180 = vector.load %arg1[%c3_145, %c0_146, %c32_147] : memref<4x3x384xf32, #tpu.memory_space<vmem>>, vector<1x3x256xf32>
    %181 = vector.shape_cast %180 : vector<1x3x256xf32> to vector<3x256xf32>
    %cst_148 = arith.constant 0.000000e+00 : f32
    %182 = vector.shape_cast %20 : vector<1x256xi1> to vector<1x256xi1>
    %183 = vector.broadcast %182 : vector<1x256xi1> to vector<3x256xi1>
    %184 = vector.broadcast %cst_148 : f32 to vector<3x256xf32>
    %185 = arith.select %183, %181, %184 : vector<3x256xi1>, vector<3x256xf32>
    %c48_149 = arith.constant 48 : index
    %c768_150 = arith.constant 768 : index
    %186 = vector.load %arg7[%c48_149, %c768_150] : memref<72x1024xf32, #tpu.memory_space<vmem>>, vector<3x256xf32>
    tpu.vector_store %arg7[%c48_149, %c768_150], %185 {strides = array<i32>} : memref<72x1024xf32, #tpu.memory_space<vmem>>, vector<3x256xf32>,
    %c0_151 = arith.constant 0 : index
    %c0_152 = arith.constant 0 : index
    %c33 = arith.constant 33 : index
    %187 = vector.load %arg1[%c0_151, %c0_152, %c33] : memref<4x3x384xf32, #tpu.memory_space<vmem>>, vector<1x3x256xf32>
    %188 = vector.shape_cast %187 : vector<1x3x256xf32> to vector<3x256xf32>
    %c56 = arith.constant 56 : index
    %c0_153 = arith.constant 0 : index
    %189 = vector.load %arg7[%c56, %c0_153] : memref<72x1024xf32, #tpu.memory_space<vmem>>, vector<3x256xf32>
    tpu.vector_store %arg7[%c56, %c0_153], %188 {strides = array<i32>} : memref<72x1024xf32, #tpu.memory_space<vmem>>, vector<3x256xf32>,
    %c1_154 = arith.constant 1 : index
    %c0_155 = arith.constant 0 : index
    %c33_156 = arith.constant 33 : index
    %190 = vector.load %arg1[%c1_154, %c0_155, %c33_156] : memref<4x3x384xf32, #tpu.memory_space<vmem>>, vector<1x3x256xf32>
    %191 = vector.shape_cast %190 : vector<1x3x256xf32> to vector<3x256xf32>
    %c56_157 = arith.constant 56 : index
    %c256_158 = arith.constant 256 : index
    %192 = vector.load %arg7[%c56_157, %c256_158] : memref<72x1024xf32, #tpu.memory_space<vmem>>, vector<3x256xf32>
    tpu.vector_store %arg7[%c56_157, %c256_158], %191 {strides = array<i32>} : memref<72x1024xf32, #tpu.memory_space<vmem>>, vector<3x256xf32>,
    %c2_159 = arith.constant 2 : index
    %c0_160 = arith.constant 0 : index
    %c33_161 = arith.constant 33 : index
    %193 = vector.load %arg1[%c2_159, %c0_160, %c33_161] : memref<4x3x384xf32, #tpu.memory_space<vmem>>, vector<1x3x256xf32>
    %194 = vector.shape_cast %193 : vector<1x3x256xf32> to vector<3x256xf32>
    %c56_162 = arith.constant 56 : index
    %c512_163 = arith.constant 512 : index
    %195 = vector.load %arg7[%c56_162, %c512_163] : memref<72x1024xf32, #tpu.memory_space<vmem>>, vector<3x256xf32>
    tpu.vector_store %arg7[%c56_162, %c512_163], %194 {strides = array<i32>} : memref<72x1024xf32, #tpu.memory_space<vmem>>, vector<3x256xf32>,
    %c3_164 = arith.constant 3 : index
    %c0_165 = arith.constant 0 : index
    %c33_166 = arith.constant 33 : index
    %196 = vector.load %arg1[%c3_164, %c0_165, %c33_166] : memref<4x3x384xf32, #tpu.memory_space<vmem>>, vector<1x3x256xf32>
    %197 = vector.shape_cast %196 : vector<1x3x256xf32> to vector<3x256xf32>
    %c56_167 = arith.constant 56 : index
    %c768_168 = arith.constant 768 : index
    %198 = vector.load %arg7[%c56_167, %c768_168] : memref<72x1024xf32, #tpu.memory_space<vmem>>, vector<3x256xf32>
    tpu.vector_store %arg7[%c56_167, %c768_168], %197 {strides = array<i32>} : memref<72x1024xf32, #tpu.memory_space<vmem>>, vector<3x256xf32>,
    %c0_169 = arith.constant 0 : index
    %c0_170 = arith.constant 0 : index
    %c34 = arith.constant 34 : index
    %199 = vector.load %arg1[%c0_169, %c0_170, %c34] : memref<4x3x384xf32, #tpu.memory_space<vmem>>, vector<1x3x256xf32>
    %200 = vector.shape_cast %199 : vector<1x3x256xf32> to vector<3x256xf32>
    %cst_171 = arith.constant 0.000000e+00 : f32
    %201 = vector.shape_cast %22 : vector<1x256xi1> to vector<1x256xi1>
    %202 = vector.broadcast %201 : vector<1x256xi1> to vector<3x256xi1>
    %203 = vector.broadcast %cst_171 : f32 to vector<3x256xf32>
    %204 = arith.select %202, %200, %203 : vector<3x256xi1>, vector<3x256xf32>
    %c64 = arith.constant 64 : index
    %c0_172 = arith.constant 0 : index
    %205 = vector.load %arg7[%c64, %c0_172] : memref<72x1024xf32, #tpu.memory_space<vmem>>, vector<3x256xf32>
    tpu.vector_store %arg7[%c64, %c0_172], %204 {strides = array<i32>} : memref<72x1024xf32, #tpu.memory_space<vmem>>, vector<3x256xf32>,
    %c1_173 = arith.constant 1 : index
    %c0_174 = arith.constant 0 : index
    %c34_175 = arith.constant 34 : index
    %206 = vector.load %arg1[%c1_173, %c0_174, %c34_175] : memref<4x3x384xf32, #tpu.memory_space<vmem>>, vector<1x3x256xf32>
    %207 = vector.shape_cast %206 : vector<1x3x256xf32> to vector<3x256xf32>
    %cst_176 = arith.constant 0.000000e+00 : f32
    %208 = vector.shape_cast %22 : vector<1x256xi1> to vector<1x256xi1>
    %209 = vector.broadcast %208 : vector<1x256xi1> to vector<3x256xi1>
    %210 = vector.broadcast %cst_176 : f32 to vector<3x256xf32>
    %211 = arith.select %209, %207, %210 : vector<3x256xi1>, vector<3x256xf32>
    %c64_177 = arith.constant 64 : index
    %c256_178 = arith.constant 256 : index
    %212 = vector.load %arg7[%c64_177, %c256_178] : memref<72x1024xf32, #tpu.memory_space<vmem>>, vector<3x256xf32>
    tpu.vector_store %arg7[%c64_177, %c256_178], %211 {strides = array<i32>} : memref<72x1024xf32, #tpu.memory_space<vmem>>, vector<3x256xf32>,
    %c2_179 = arith.constant 2 : index
    %c0_180 = arith.constant 0 : index
    %c34_181 = arith.constant 34 : index
    %213 = vector.load %arg1[%c2_179, %c0_180, %c34_181] : memref<4x3x384xf32, #tpu.memory_space<vmem>>, vector<1x3x256xf32>
    %214 = vector.shape_cast %213 : vector<1x3x256xf32> to vector<3x256xf32>
    %cst_182 = arith.constant 0.000000e+00 : f32
    %215 = vector.shape_cast %22 : vector<1x256xi1> to vector<1x256xi1>
    %216 = vector.broadcast %215 : vector<1x256xi1> to vector<3x256xi1>
    %217 = vector.broadcast %cst_182 : f32 to vector<3x256xf32>
    %218 = arith.select %216, %214, %217 : vector<3x256xi1>, vector<3x256xf32>
    %c64_183 = arith.constant 64 : index
    %c512_184 = arith.constant 512 : index
    %219 = vector.load %arg7[%c64_183, %c512_184] : memref<72x1024xf32, #tpu.memory_space<vmem>>, vector<3x256xf32>
    tpu.vector_store %arg7[%c64_183, %c512_184], %218 {strides = array<i32>} : memref<72x1024xf32, #tpu.memory_space<vmem>>, vector<3x256xf32>,
    %c3_185 = arith.constant 3 : index
    %c0_186 = arith.constant 0 : index
    %c34_187 = arith.constant 34 : index
    %220 = vector.load %arg1[%c3_185, %c0_186, %c34_187] : memref<4x3x384xf32, #tpu.memory_space<vmem>>, vector<1x3x256xf32>
    %221 = vector.shape_cast %220 : vector<1x3x256xf32> to vector<3x256xf32>
    %cst_188 = arith.constant 0.000000e+00 : f32
    %222 = vector.shape_cast %22 : vector<1x256xi1> to vector<1x256xi1>
    %223 = vector.broadcast %222 : vector<1x256xi1> to vector<3x256xi1>
    %224 = vector.broadcast %cst_188 : f32 to vector<3x256xf32>
    %225 = arith.select %223, %221, %224 : vector<3x256xi1>, vector<3x256xf32>
    %c64_189 = arith.constant 64 : index
    %c768_190 = arith.constant 768 : index
    %226 = vector.load %arg7[%c64_189, %c768_190] : memref<72x1024xf32, #tpu.memory_space<vmem>>, vector<3x256xf32>
    tpu.vector_store %arg7[%c64_189, %c768_190], %225 {strides = array<i32>} : memref<72x1024xf32, #tpu.memory_space<vmem>>, vector<3x256xf32>,
    %c0_191 = arith.constant 0 : index
    %c0_192 = arith.constant 0 : index
    %227 = vector.load %arg2[%c0_191, %c0_192] : memref<32x72xf32, #tpu.memory_space<vmem>>, vector<32x72xf32>
    %c0_193 = arith.constant 0 : index
    %c0_194 = arith.constant 0 : index
    %228 = vector.load %arg7[%c0_193, %c0_194] : memref<72x1024xf32, #tpu.memory_space<vmem>>, vector<72x1024xf32>
    %cst_195 = arith.constant dense<0.000000e+00> : vector<32x1024xf32>
    %229 = tpu.matmul %227, %228, %cst_195 {dimension_numbers = #tpu.dot_dimension_numbers<[1], [0], [0], [1], [0, 0, 1, 1], [], []>} : vector<32x72xf32>, vector<72x1024xf32>, vector<32x1024xf32> -> vector<32x1024xf32>
    %c0_196 = arith.constant 0 : index
    %c0_197 = arith.constant 0 : index
    %230 = vector.load %arg3[%c0_196, %c0_197] : memref<32x1xf32, #tpu.memory_space<vmem>>, vector<32x1xf32>
    %231 = vector.broadcast %230 : vector<32x1xf32> to vector<32x1024xf32>
    %232 = arith.addf %229, %231 : vector<32x1024xf32>
    %cst_198 = arith.constant 0.000000e+00 : f32
    %233 = vector.broadcast %cst_198 : f32 to vector<32x1024xf32>
    %234 = arith.maximumf %232, %233 : vector<32x1024xf32>
    %c0_199 = arith.constant 0 : index
    %c0_200 = arith.constant 0 : index
    %235 = vector.load %arg4[%c0_199, %c0_200] : memref<20x32xf32, #tpu.memory_space<vmem>>, vector<20x32xf32>
    %cst_201 = arith.constant dense<0.000000e+00> : vector<20x1024xf32>
    %236 = tpu.matmul %235, %234, %cst_201 {dimension_numbers = #tpu.dot_dimension_numbers<[1], [0], [0], [1], [0, 0, 1, 1], [], []>} : vector<20x32xf32>, vector<32x1024xf32>, vector<20x1024xf32> -> vector<20x1024xf32>
    %c0_202 = arith.constant 0 : index
    %c0_203 = arith.constant 0 : index
    %237 = vector.load %arg5[%c0_202, %c0_203] : memref<20x1xf32, #tpu.memory_space<vmem>>, vector<20x1xf32>
    %238 = vector.broadcast %237 : vector<20x1xf32> to vector<20x1024xf32>
    %239 = arith.addf %236, %238 : vector<20x1024xf32>
    %240 = vector.extract_strided_slice %239 {offsets = [0, 0], sizes = [20, 256], strides = [1, 1]} : vector<20x1024xf32> to vector<20x256xf32>
    %c0_204 = arith.constant 0 : index
    %c0_205 = arith.constant 0 : index
    %c0_206 = arith.constant 0 : index
    %241 = vector.load %arg6[%c0_204, %c0_205, %c0_206] : memref<4x20x256xf32, #tpu.memory_space<vmem>>, vector<1x20x256xf32>
    %242 = vector.shape_cast %241 : vector<1x20x256xf32> to vector<20x256xf32>
    %243 = vector.shape_cast %240 : vector<20x256xf32> to vector<1x20x256xf32>
    tpu.vector_store %arg6[%c0_204, %c0_205, %c0_206], %243 {strides = array<i32>} : memref<4x20x256xf32, #tpu.memory_space<vmem>>, vector<1x20x256xf32>,
    %244 = vector.extract_strided_slice %239 {offsets = [0, 256], sizes = [20, 256], strides = [1, 1]} : vector<20x1024xf32> to vector<20x256xf32>
    %c1_207 = arith.constant 1 : index
    %c0_208 = arith.constant 0 : index
    %c0_209 = arith.constant 0 : index
    %245 = vector.load %arg6[%c1_207, %c0_208, %c0_209] : memref<4x20x256xf32, #tpu.memory_space<vmem>>, vector<1x20x256xf32>
    %246 = vector.shape_cast %245 : vector<1x20x256xf32> to vector<20x256xf32>
    %247 = vector.shape_cast %244 : vector<20x256xf32> to vector<1x20x256xf32>
    tpu.vector_store %arg6[%c1_207, %c0_208, %c0_209], %247 {strides = array<i32>} : memref<4x20x256xf32, #tpu.memory_space<vmem>>, vector<1x20x256xf32>,
    %248 = vector.extract_strided_slice %239 {offsets = [0, 512], sizes = [20, 256], strides = [1, 1]} : vector<20x1024xf32> to vector<20x256xf32>
    %c2_210 = arith.constant 2 : index
    %c0_211 = arith.constant 0 : index
    %c0_212 = arith.constant 0 : index
    %249 = vector.load %arg6[%c2_210, %c0_211, %c0_212] : memref<4x20x256xf32, #tpu.memory_space<vmem>>, vector<1x20x256xf32>
    %250 = vector.shape_cast %249 : vector<1x20x256xf32> to vector<20x256xf32>
    %251 = vector.shape_cast %248 : vector<20x256xf32> to vector<1x20x256xf32>
    tpu.vector_store %arg6[%c2_210, %c0_211, %c0_212], %251 {strides = array<i32>} : memref<4x20x256xf32, #tpu.memory_space<vmem>>, vector<1x20x256xf32>,
    %252 = vector.extract_strided_slice %239 {offsets = [0, 768], sizes = [20, 256], strides = [1, 1]} : vector<20x1024xf32> to vector<20x256xf32>
    %c3_213 = arith.constant 3 : index
    %c0_214 = arith.constant 0 : index
    %c0_215 = arith.constant 0 : index
    %253 = vector.load %arg6[%c3_213, %c0_214, %c0_215] : memref<4x20x256xf32, #tpu.memory_space<vmem>>, vector<1x20x256xf32>
    %254 = vector.shape_cast %253 : vector<1x20x256xf32> to vector<20x256xf32>
    %255 = vector.shape_cast %252 : vector<20x256xf32> to vector<1x20x256xf32>
    tpu.vector_store %arg6[%c3_213, %c0_214, %c0_215], %255 {strides = array<i32>} : memref<4x20x256xf32, #tpu.memory_space<vmem>>, vector<1x20x256xf32>,
    return
  }
  func.func @transform_0(%arg0: i32) -> (i32, i32, i32) {
    %c0_i32 = arith.constant 0 : i32
    %c0_i32_0 = arith.constant 0 : i32
    %c0_i32_1 = arith.constant 0 : i32
    return %arg0, %c0_i32, %c0_i32_0 : i32, i32, i32
  }
  func.func @transform_1(%arg0: i32) -> (i32, i32) {
    %c0_i32 = arith.constant 0 : i32
    %c0_i32_0 = arith.constant 0 : i32
    %c0_i32_1 = arith.constant 0 : i32
    return %c0_i32, %c0_i32_0 : i32, i32
  }
  func.func @transform_2(%arg0: i32) -> (i32, i32) {
    %c0_i32 = arith.constant 0 : i32
    %c0_i32_0 = arith.constant 0 : i32
    %c0_i32_1 = arith.constant 0 : i32
    return %c0_i32, %c0_i32_0 : i32, i32
  }
  func.func @transform_3(%arg0: i32) -> (i32, i32) {
    %c0_i32 = arith.constant 0 : i32
    %c0_i32_0 = arith.constant 0 : i32
    %c0_i32_1 = arith.constant 0 : i32
    return %c0_i32, %c0_i32_0 : i32, i32
  }
  func.func @transform_4(%arg0: i32) -> (i32, i32) {
    %c0_i32 = arith.constant 0 : i32
    %c0_i32_0 = arith.constant 0 : i32
    %c0_i32_1 = arith.constant 0 : i32
    return %c0_i32, %c0_i32_0 : i32, i32
  }
  func.func @transform_5(%arg0: i32) -> (i32, i32, i32) {
    %c0_i32 = arith.constant 0 : i32
    %c0_i32_0 = arith.constant 0 : i32
    %c0_i32_1 = arith.constant 0 : i32
    return %arg0, %c0_i32, %c0_i32_0 : i32, i32, i32
  }
}

</mosaic_0001>

<llo_original>
// kernel: tpu_custom_call.1
$region0: #{tpu_custom_call.1}
  #allocation0 [shape = 'u32[]', space=smem, size = 0x4, offset = 0x4, fixed_abs, tag = 'smem constant byte address 0x4 - core index']
  #allocation1 [shape = 'u32[144,128]{1,0:T(1,128)}', space=vmem, size = 0x12000, scoped, tag = 'internal scratch']
  #allocation2 [shape = 'f32[72,1024]{1,0:T(8,128)}', space=vmem, size = 0x48000, scoped, tag = 'scratch operand']
  %s0 = inlined_call_operand.vmem [shape: f32[8,3,384], index: 0, kind: input, shape index: {}]
  %s1 = inlined_call_operand.vmem [shape: f32[32,72], index: 1, kind: input, shape index: {}]
  %s2 = inlined_call_operand.vmem [shape: f32[32,1], index: 2, kind: input, shape index: {}]
  %s3 = inlined_call_operand.vmem [shape: f32[20,32], index: 3, kind: input, shape index: {}]
  %s4 = inlined_call_operand.vmem [shape: f32[20,1], index: 4, kind: input, shape index: {}]
  %s5 = inlined_call_operand.vmem [shape: f32[8,20,256], index: 5, kind: output, shape index: {}]
  %s6 = sld [smem:[#allocation0]]
  $region53: #{tpu_custom_call.1} parent=0
    _
  %s8 = ssub.s32 1, %s6
  %s9 = scalar_select 0, %s8, %s6
  loop: start=0, step=1, limit=4
  $region2: #{tpu_custom_call.1} parent=0 // loop_pre_header
    _
  $region3: #{tpu_custom_call.1} parent=0 // loop_header
    %s11 = sphi 0, %s15
    %p12 = scmp.ge.s32.totalorder %s11, 4
    %s21 = sphi 0, %s23
    %s24 = sphi 0, %s21
    %s25 = sphi 0, %s24
    %s41 = sphi 0, %s25
    %s45 = sphi 0, %s45
    %s47 = sphi 0, %s45
    %s48 = sphi 0, %s47
    %s62 = sphi 0, %s48
    %s66 = sphi 0, %s66
    %s68 = sphi 0, %s66
    %s69 = sphi 0, %s68
    %s83 = sphi 0, %s69
    %s87 = sphi 0, %s87
    %s89 = sphi 0, %s87
    %s90 = sphi 0, %s89
    %s104 = sphi 0, %s90
    %s108 = sphi 0, %s108
    %s110 = sphi 0, %s108
    %s111 = sphi 0, %s110
    %s125 = sphi 0, %s111
    %s131 = sphi 0, %s133
    %s134 = sphi 0, %s131
    %s135 = sphi 0, %s134
    %s151 = sphi 0, %s135
  $region4: #{tpu_custom_call.1} parent=0 // loop_header_branch
    %14 = sbr.rel (%p12) target = $region8
  $region5: #{tpu_custom_call.1} parent=0 // loop_body
    %s16 = ssub.s32 %s11, 1
    %s17 = ssub.s32 %s11, 2
    %s18 = sadd.s32 %s11, 1
    %s19 = ssub.s32 %s11, %s18
    %p20 = scmp.eq.s32.totalorder %s19, 0
    %s22 = sadd.s32 %s21, 1
    %s23 = scalar_select %p20, %s21, %s22
    %p26 = pneg %p20
    %p27 = scmp.eq.s32.totalorder %s11, 1
    %p28 = por %p26, %p27
    %p29 = scmp.ne.s32.totalorder %s21, %s24
    %p30 = scmp.eq.s32.totalorder %s11, 0
    %p31 = por %p29, %p30
    %p32 = scmp.ne.s32.totalorder %s21, %s24
    %p33 = scmp.eq.s32.totalorder %s16, 1
    %p34 = por %p32, %p33
    %p35 = scmp.ne.s32.totalorder %s24, %s25
    %p36 = scmp.eq.s32.totalorder %s16, 0
    %p37 = por %p35, %p36
    %p38 = scmp.ne.s32.totalorder %s24, %s25
    %p39 = scmp.eq.s32.totalorder %s17, 1
    %p40 = por %p38, %p39
    %p42 = scmp.ne.s32.totalorder %s25, %s41
    %p43 = scmp.eq.s32.totalorder %s17, 0
    %p44 = por %p42, %p43
    %s46 = sadd.s32 %s45, 1
    %p49 = scmp.eq.s32.totalorder %s11, 1
    %p50 = scmp.ne.s32.totalorder %s45, %s47
    %p51 = scmp.eq.s32.totalorder %s11, 0
    %p52 = por %p50, %p51
    %p53 = scmp.ne.s32.totalorder %s45, %s47
    %p54 = scmp.eq.s32.totalorder %s16, 1
    %p55 = por %p53, %p54
    %p56 = scmp.ne.s32.totalorder %s47, %s48
    %p57 = scmp.eq.s32.totalorder %s16, 0
    %p58 = por %p56, %p57
    %p59 = scmp.ne.s32.totalorder %s47, %s48
    %p60 = scmp.eq.s32.totalorder %s17, 1
    %p61 = por %p59, %p60
    %p63 = scmp.ne.s32.totalorder %s48, %s62
    %p64 = scmp.eq.s32.totalorder %s17, 0
    %p65 = por %p63, %p64
    %s67 = sadd.s32 %s66, 1
    %p70 = scmp.eq.s32.totalorder %s11, 1
    %p71 = scmp.ne.s32.totalorder %s66, %s68
    %p72 = scmp.eq.s32.totalorder %s11, 0
    %p73 = por %p71, %p72
    %p74 = scmp.ne.s32.totalorder %s66, %s68
    %p75 = scmp.eq.s32.totalorder %s16, 1
    %p76 = por %p74, %p75
    %p77 = scmp.ne.s32.totalorder %s68, %s69
    %p78 = scmp.eq.s32.totalorder %s16, 0
    %p79 = por %p77, %p78
    %p80 = scmp.ne.s32.totalorder %s68, %s69
    %p81 = scmp.eq.s32.totalorder %s17, 1
    %p82 = por %p80, %p81
    %p84 = scmp.ne.s32.totalorder %s69, %s83
    %p85 = scmp.eq.s32.totalorder %s17, 0
    %p86 = por %p84, %p85
    %s88 = sadd.s32 %s87, 1
    %p91 = scmp.eq.s32.totalorder %s11, 1
    %p92 = scmp.ne.s32.totalorder %s87, %s89
    %p93 = scmp.eq.s32.totalorder %s11, 0
    %p94 = por %p92, %p93
    %p95 = scmp.ne.s32.totalorder %s87, %s89
    %p96 = scmp.eq.s32.totalorder %s16, 1
    %p97 = por %p95, %p96
    %p98 = scmp.ne.s32.totalorder %s89, %s90
    %p99 = scmp.eq.s32.totalorder %s16, 0
    %p100 = por %p98, %p99
    %p101 = scmp.ne.s32.totalorder %s89, %s90
    %p102 = scmp.eq.s32.totalorder %s17, 1
    %p103 = por %p101, %p102
    %p105 = scmp.ne.s32.totalorder %s90, %s104
    %p106 = scmp.eq.s32.totalorder %s17, 0
    %p107 = por %p105, %p106
    %s109 = sadd.s32 %s108, 1
    %p112 = scmp.eq.s32.totalorder %s11, 1
    %p113 = scmp.ne.s32.totalorder %s108, %s110
    %p114 = scmp.eq.s32.totalorder %s11, 0
    %p115 = por %p113, %p114
    %p116 = scmp.ne.s32.totalorder %s108, %s110
    %p117 = scmp.eq.s32.totalorder %s16, 1
    %p118 = por %p116, %p117
    %p119 = scmp.ne.s32.totalorder %s110, %s111
    %p120 = scmp.eq.s32.totalorder %s16, 0
    %p121 = por %p119, %p120
    %p122 = scmp.ne.s32.totalorder %s110, %s111
    %p123 = scmp.eq.s32.totalorder %s17, 1
    %p124 = por %p122, %p123
    %p126 = scmp.ne.s32.totalorder %s111, %s125
    %p127 = scmp.eq.s32.totalorder %s17, 0
    %p128 = por %p126, %p127
    %s129 = ssub.s32 %s11, %s18
    %p130 = scmp.eq.s32.totalorder %s129, 0
    %s132 = sadd.s32 %s131, 1
    %s133 = scalar_select %p130, %s131, %s132
    %p136 = pneg %p130
    %p137 = scmp.eq.s32.totalorder %s11, 1
    %p138 = por %p136, %p137
    %p139 = scmp.ne.s32.totalorder %s131, %s134
    %p140 = scmp.eq.s32.totalorder %s11, 0
    %p141 = por %p139, %p140
    %p142 = scmp.ne.s32.totalorder %s131, %s134
    %p143 = scmp.eq.s32.totalorder %s16, 1
    %p144 = por %p142, %p143
    %p145 = scmp.ne.s32.totalorder %s134, %s135
    %p146 = scmp.eq.s32.totalorder %s16, 0
    %p147 = por %p145, %p146
    %p148 = scmp.ne.s32.totalorder %s134, %s135
    %p149 = scmp.eq.s32.totalorder %s17, 1
    %p150 = por %p148, %p149
    %p152 = scmp.ne.s32.totalorder %s135, %s151
    %p153 = scmp.eq.s32.totalorder %s17, 0
    %p154 = por %p152, %p153
    %p155 = scmp.le.s32.totalorder 1, %s11
    %p156 = scmp.lt.s32.totalorder %s11, 3
    %p157 = pnand %p155, %p156
    %p158 = pneg %p157
    // Predicated region
    $region9: #{tpu_custom_call.1} parent=5 // pred_check
      _
    $region10: #{tpu_custom_call.1} parent=5 // pred_check_branch
      %160 = sbr.rel (%p157) target = $region12
    $region11: #{tpu_custom_call.1} parent=5 // pred_region
      %s161 = ssub.s32 %s11, 1
      // Predicated region
      $region13: #{tpu_custom_call.1} parent=11 // pred_check
        %p162 = pneg %p58
      $region14: #{tpu_custom_call.1} parent=11 // pred_check_branch
        %164 = sbr.rel (%p162) target = $region16
      $region15: #{tpu_custom_call.1} parent=11 // pred_region
        _
      $region16: #{tpu_custom_call.1} parent=11 // pred_fallthru
        _
      // Predicated region
      $region17: #{tpu_custom_call.1} parent=11 // pred_check
        %p165 = pneg %p79
      $region18: #{tpu_custom_call.1} parent=11 // pred_check_branch
        %167 = sbr.rel (%p165) target = $region20
      $region19: #{tpu_custom_call.1} parent=11 // pred_region
        _
      $region20: #{tpu_custom_call.1} parent=11 // pred_fallthru
        _
      // Predicated region
      $region21: #{tpu_custom_call.1} parent=11 // pred_check
        %p168 = pneg %p100
      $region22: #{tpu_custom_call.1} parent=11 // pred_check_branch
        %170 = sbr.rel (%p168) target = $region24
      $region23: #{tpu_custom_call.1} parent=11 // pred_region
        _
      $region24: #{tpu_custom_call.1} parent=11 // pred_fallthru
        _
      // Predicated region
      $region25: #{tpu_custom_call.1} parent=11 // pred_check
        %p171 = pneg %p121
      $region26: #{tpu_custom_call.1} parent=11 // pred_check_branch
        %173 = sbr.rel (%p171) target = $region28
      $region27: #{tpu_custom_call.1} parent=11 // pred_region
        _
      $region28: #{tpu_custom_call.1} parent=11 // pred_fallthru
        _
    $region12: #{tpu_custom_call.1} parent=5 // pred_fallthru
      _
    %p174 = scmp.lt.s32.totalorder %s11, 2
    // Predicated region
    $region29: #{tpu_custom_call.1} parent=5 // pred_check
      %p175 = pneg %p174
    $region30: #{tpu_custom_call.1} parent=5 // pred_check_branch
      %177 = sbr.rel (%p175) target = $region32
    $region31: #{tpu_custom_call.1} parent=5 // pred_region
      // Predicated region
      $region33: #{tpu_custom_call.1} parent=31 // pred_check
        %p178 = pneg %p31
      $region34: #{tpu_custom_call.1} parent=31 // pred_check_branch
        %180 = sbr.rel (%p178) target = $region36
      $region35: #{tpu_custom_call.1} parent=31 // pred_region
        %s181 = smul.u32 4, %s11
        %p182 = scmp.lt.s32.totalorder %s181, 7
        %s183 = scalar_select %p182, %s181, 7
        %s184 = smul.addr %s183, 3
        %s185 = smul.addr %s184, 4
        %s186 = scalar_lea.vmem %s0, %s185
        %s187 = smul.u32 4, %s11
      $region36: #{tpu_custom_call.1} parent=31 // pred_fallthru
        _
    $region32: #{tpu_custom_call.1} parent=5 // pred_fallthru
      _
    %p188 = scmp.le.s32.totalorder 1, %s11
    %p189 = scmp.lt.s32.totalorder %s11, 3
    %p190 = pnand %p188, %p189
    %p191 = pneg %p190
    // Predicated region
    $region37: #{tpu_custom_call.1} parent=5 // pred_check
      _
    $region38: #{tpu_custom_call.1} parent=5 // pred_check_branch
      %193 = sbr.rel (%p190) target = $region40
    $region39: #{tpu_custom_call.1} parent=5 // pred_region
      %s194 = ssub.s32 %s11, 1
      %s195 = smul.u32 4, %s16
      %p196 = scmp.lt.s32.totalorder %s195, 7
      %s197 = scalar_select %p196, %s195, 7
      %s198 = smul.addr %s197, 3
      %s199 = smul.addr %s198, 4
      %s200 = scalar_lea.vmem %s0, %s199
      %p201 = pneg %p37
      %p202 = pneg %p34
      %p203 = pneg %p58
      %p204 = pneg %p55
      %p205 = pneg %p79
      %p206 = pneg %p76
      %p207 = pneg %p100
      %p208 = pneg %p97
      %p209 = pneg %p121
      %p210 = pneg %p118
      %p211 = pneg %p147
      %p212 = pneg %p144
      %s213 = smul.u32 4, %s16
      %p214 = scmp.lt.s32.totalorder %s213, 7
      %s215 = scalar_select %p214, %s213, 7
      %s216 = smul.addr %s215, 6
      %s217 = smul.addr %s216, 8
      %s218 = scalar_lea.vmem %s5, %s217
      %s219 = smul.u32 4, %s16
      %p220 = scmp.lt.s32.totalorder %s219, 7
      %s221 = scalar_select %p220, %s219, 7
      %s222 = smul.addr %s221, 3
      %s223 = smul.addr %s222, 4
      %s224 = scalar_lea.vmem %s0, %s223
      %s225 = smul.u32 4, %s16
      %s226 = smul.u32 4, %s16
      %p227 = scmp.lt.s32.totalorder %s226, 7
      %s228 = scalar_select %p227, %s226, 7
      %s229 = smul.addr %s228, 6
      %s230 = smul.addr %s229, 8
      %s231 = scalar_lea.vmem %s5, %s230
      %s232 = smul.u32 4, %s16
      %233 = vst [vmem:[#allocation2] sm:$0xff] 0.0
      %234 = vst [vmem:[#allocation2 + $0x8] sm:$0xff] 0.0
      %235 = vst [vmem:[#allocation2 + $0x10] sm:$0xff] 0.0
      %236 = vst [vmem:[#allocation2 + $0x18] sm:$0xff] 0.0
      %237 = vst [vmem:[#allocation2 + $0x20] sm:$0xff] 0.0
      %238 = vst [vmem:[#allocation2 + $0x28] sm:$0xff] 0.0
      %239 = vst [vmem:[#allocation2 + $0x30] sm:$0xff] 0.0
      %240 = vst [vmem:[#allocation2 + $0x38] sm:$0xff] 0.0
      %241 = vst [vmem:[#allocation2 + $0x40] sm:$0xff] 0.0
      %242 = vst [vmem:[#allocation2 + $0x48] sm:$0xff] 0.0
      %243 = vst [vmem:[#allocation2 + $0x50] sm:$0xff] 0.0
      %244 = vst [vmem:[#allocation2 + $0x58] sm:$0xff] 0.0
      %245 = vst [vmem:[#allocation2 + $0x60] sm:$0xff] 0.0
      %246 = vst [vmem:[#allocation2 + $0x68] sm:$0xff] 0.0
      %247 = vst [vmem:[#allocation2 + $0x70] sm:$0xff] 0.0
      %248 = vst [vmem:[#allocation2 + $0x78] sm:$0xff] 0.0
      %249 = vst [vmem:[#allocation2 + $0x80] sm:$0xff] 0.0
      %250 = vst [vmem:[#allocation2 + $0x88] sm:$0xff] 0.0
      %251 = vst [vmem:[#allocation2 + $0x90] sm:$0xff] 0.0
      %252 = vst [vmem:[#allocation2 + $0x98] sm:$0xff] 0.0
      %253 = vst [vmem:[#allocation2 + $0xa0] sm:$0xff] 0.0
      %254 = vst [vmem:[#allocation2 + $0xa8] sm:$0xff] 0.0
      %255 = vst [vmem:[#allocation2 + $0xb0] sm:$0xff] 0.0
      %256 = vst [vmem:[#allocation2 + $0xb8] sm:$0xff] 0.0
      %257 = vst [vmem:[#allocation2 + $0xc0] sm:$0xff] 0.0
      %258 = vst [vmem:[#allocation2 + $0xc8] sm:$0xff] 0.0
      %259 = vst [vmem:[#allocation2 + $0xd0] sm:$0xff] 0.0
      %260 = vst [vmem:[#allocation2 + $0xd8] sm:$0xff] 0.0
      %261 = vst [vmem:[#allocation2 + $0xe0] sm:$0xff] 0.0
      %262 = vst [vmem:[#allocation2 + $0xe8] sm:$0xff] 0.0
      %263 = vst [vmem:[#allocation2 + $0xf0] sm:$0xff] 0.0
      %264 = vst [vmem:[#allocation2 + $0xf8] sm:$0xff] 0.0
      %265 = vst [vmem:[#allocation2 + $0x100] sm:$0xff] 0.0
      %266 = vst [vmem:[#allocation2 + $0x108] sm:$0xff] 0.0
      %267 = vst [vmem:[#allocation2 + $0x110] sm:$0xff] 0.0
      %268 = vst [vmem:[#allocation2 + $0x118] sm:$0xff] 0.0
      %269 = vst [vmem:[#allocation2 + $0x120] sm:$0xff] 0.0
      %270 = vst [vmem:[#allocation2 + $0x128] sm:$0xff] 0.0
      %271 = vst [vmem:[#allocation2 + $0x130] sm:$0xff] 0.0
      %272 = vst [vmem:[#allocation2 + $0x138] sm:$0xff] 0.0
      %273 = vst [vmem:[#allocation2 + $0x140] sm:$0xff] 0.0
      %274 = vst [vmem:[#allocation2 + $0x148] sm:$0xff] 0.0
      %275 = vst [vmem:[#allocation2 + $0x150] sm:$0xff] 0.0
      %276 = vst [vmem:[#allocation2 + $0x158] sm:$0xff] 0.0
      %277 = vst [vmem:[#allocation2 + $0x160] sm:$0xff] 0.0
      %278 = vst [vmem:[#allocation2 + $0x168] sm:$0xff] 0.0
      %279 = vst [vmem:[#allocation2 + $0x170] sm:$0xff] 0.0
      %280 = vst [vmem:[#allocation2 + $0x178] sm:$0xff] 0.0
      %281 = vst [vmem:[#allocation2 + $0x180] sm:$0xff] 0.0
      %282 = vst [vmem:[#allocation2 + $0x188] sm:$0xff] 0.0
      %283 = vst [vmem:[#allocation2 + $0x190] sm:$0xff] 0.0
      %284 = vst [vmem:[#allocation2 + $0x198] sm:$0xff] 0.0
      %285 = vst [vmem:[#allocation2 + $0x1a0] sm:$0xff] 0.0
      %286 = vst [vmem:[#allocation2 + $0x1a8] sm:$0xff] 0.0
      %287 = vst [vmem:[#allocation2 + $0x1b0] sm:$0xff] 0.0
      %288 = vst [vmem:[#allocation2 + $0x1b8] sm:$0xff] 0.0
      %289 = vst [vmem:[#allocation2 + $0x1c0] sm:$0xff] 0.0
      %290 = vst [vmem:[#allocation2 + $0x1c8] sm:$0xff] 0.0
      %291 = vst [vmem:[#allocation2 + $0x1d0] sm:$0xff] 0.0
      %292 = vst [vmem:[#allocation2 + $0x1d8] sm:$0xff] 0.0
      %293 = vst [vmem:[#allocation2 + $0x1e0] sm:$0xff] 0.0
      %294 = vst [vmem:[#allocation2 + $0x1e8] sm:$0xff] 0.0
      %295 = vst [vmem:[#allocation2 + $0x1f0] sm:$0xff] 0.0
      %296 = vst [vmem:[#allocation2 + $0x1f8] sm:$0xff] 0.0
      %297 = vst [vmem:[#allocation2 + $0x200] sm:$0xff] 0.0
      %298 = vst [vmem:[#allocation2 + $0x208] sm:$0xff] 0.0
      %299 = vst [vmem:[#allocation2 + $0x210] sm:$0xff] 0.0
      %300 = vst [vmem:[#allocation2 + $0x218] sm:$0xff] 0.0
      %301 = vst [vmem:[#allocation2 + $0x220] sm:$0xff] 0.0
      %302 = vst [vmem:[#allocation2 + $0x228] sm:$0xff] 0.0
      %303 = vst [vmem:[#allocation2 + $0x230] sm:$0xff] 0.0
      %304 = vst [vmem:[#allocation2 + $0x238] sm:$0xff] 0.0
      %v305 = vlaneseq
      %v306 = vand.u32 %v305, 127
      %v307 = vadd.s32 %v306, 128
      %vm308 = vcmp.lt.s32.totalorder %v306, 0
      %v309 = vsub.s32 0, %v306
      %v310 = vsel %vm308, %v309, %v306
      %v311 = vshrl.u32 %v310, 4
      %v312 = vand.u32 %v310, 15
      %v313 = vsub.s32 0, %v312
      %v314 = vsel %vm308, %v313, %v312
      %vm315 = vcmp.lt.s32.totalorder %v307, 0
      %v316 = vsub.s32 0, %v307
      %v317 = vsel %vm315, %v316, %v307
      %v318 = vshrl.u32 %v317, 4
      %v319 = vand.u32 %v317, 15
      %v320 = vsub.s32 0, %v319
      %v321 = vsel %vm315, %v320, %v319
      %vm322 = vcmp.ne.s32.totalorder %v314, 0
      %vm323 = vcmp.ne.s32.totalorder %v321, 0
      %vm324 = vcmp.lt.s32.totalorder %v314, 0
      %vm325 = vcmp.lt.s32.totalorder %v321, 0
      %vm326 = vmand %vm324, %vm322
      %vm327 = vmand %vm325, %vm323
      %v328 = vadd.s32 %v314, 16
      %v329 = vadd.s32 %v321, 16
      %v330 = vsel %vm326, %v328, %v314
      %v331 = vsel %vm327, %v329, %v321
      %vm332 = vcmp.ne.s32.totalorder %v330, 0
      %vm333 = vcmp.ne.s32.totalorder %v331, 0
      %vm334 = vcmp.ne.s32.totalorder %v330, 15
      %vm335 = vcmp.ne.s32.totalorder %v331, 15
      %v336 = vld [vmem:[%s224] sm:$0x77]
      %v337 = vsel %vm332, 1, 0
      %v338 = vsel %vm333, 1, 0
      %vm339 = vcmp.eq.s32.totalorder %v337, 1
      %vm340 = vcmp.eq.s32.totalorder %v338, 1
      %v342 = vcombine.high %v336, %v336
      %v344 = vsel %vm339, %v336, 0.0
      %v345 = vsel %vm340, %v342, 0.0
      %346 = vst [vmem:[#allocation2] sm:$0x7] %v344
      %347 = vst [vmem:[#allocation2 + $0x8] sm:$0x7] %v345
      %s348 = scalar_lea.vmem %s224, 12
      %v349 = vld [vmem:[%s348] sm:$0x77]
      %v351 = vcombine.high %v349, %v349
      %v353 = vsel %vm339, %v349, 0.0
      %v354 = vsel %vm340, %v351, 0.0
      %355 = vst [vmem:[#allocation2 + $0x10] sm:$0x7] %v353
      %356 = vst [vmem:[#allocation2 + $0x18] sm:$0x7] %v354
      %s357 = scalar_lea.vmem %s224, 24
      %v358 = vld [vmem:[%s357] sm:$0x77]
      %v360 = vcombine.high %v358, %v358
      %v362 = vsel %vm339, %v358, 0.0
      %v363 = vsel %vm340, %v360, 0.0
      %364 = vst [vmem:[#allocation2 + $0x20] sm:$0x7] %v362
      %365 = vst [vmem:[#allocation2 + $0x28] sm:$0x7] %v363
      %s366 = scalar_lea.vmem %s224, 36
      %v367 = vld [vmem:[%s366] sm:$0x77]
      %v369 = vcombine.high %v367, %v367
      %v371 = vsel %vm339, %v367, 0.0
      %v372 = vsel %vm340, %v369, 0.0
      %373 = vst [vmem:[#allocation2 + $0x30] sm:$0x7] %v371
      %374 = vst [vmem:[#allocation2 + $0x38] sm:$0x7] %v372
      %v375 = vld [vmem:[%s224] sm:$0x77]
      %v376 = vld [vmem:[%s224 + $0x8] sm:$0x7]
      %v379 = vcombine.high %v375, %v375
      %380 = vrot.lane.b32.xlu0 %v375, 127
      %v381 = vpop.permute.xlu0 %380
      %382 = vrot.lane.b32.xlu0 %v379, 127
      %v383 = vpop.permute.xlu0 %382
      %384 = vrot.lane.b32.xlu0 %v376, 127
      %v385 = vpop.permute.xlu0 %384
      %vm386 = vcmask 1039360
      %v387 = vsel %vm386, %v381, %v383
      %v388 = vsel %vm386, %v383, %v385
      %391 = vst [vmem:[#allocation2 + $0x40] sm:$0x7] %v387
      %392 = vst [vmem:[#allocation2 + $0x48] sm:$0x7] %v388
      %v393 = vld [vmem:[%s348] sm:$0x77]
      %v394 = vld [vmem:[%s348 + $0x8] sm:$0x7]
      %v397 = vcombine.high %v393, %v393
      %398 = vrot.lane.b32.xlu0 %v393, 127
      %v399 = vpop.permute.xlu0 %398
      %400 = vrot.lane.b32.xlu0 %v397, 127
      %v401 = vpop.permute.xlu0 %400
      %402 = vrot.lane.b32.xlu0 %v394, 127
      %v403 = vpop.permute.xlu0 %402
      %v404 = vsel %vm386, %v399, %v401
      %v405 = vsel %vm386, %v401, %v403
      %408 = vst [vmem:[#allocation2 + $0x50] sm:$0x7] %v404
      %409 = vst [vmem:[#allocation2 + $0x58] sm:$0x7] %v405
      %v410 = vld [vmem:[%s357] sm:$0x77]
      %v411 = vld [vmem:[%s357 + $0x8] sm:$0x7]
      %v414 = vcombine.high %v410, %v410
      %415 = vrot.lane.b32.xlu0 %v410, 127
      %v416 = vpop.permute.xlu0 %415
      %417 = vrot.lane.b32.xlu0 %v414, 127
      %v418 = vpop.permute.xlu0 %417
      %419 = vrot.lane.b32.xlu0 %v411, 127
      %v420 = vpop.permute.xlu0 %419
      %v421 = vsel %vm386, %v416, %v418
      %v422 = vsel %vm386, %v418, %v420
      %425 = vst [vmem:[#allocation2 + $0x60] sm:$0x7] %v421
      %426 = vst [vmem:[#allocation2 + $0x68] sm:$0x7] %v422
      %v427 = vld [vmem:[%s366] sm:$0x77]
      %v428 = vld [vmem:[%s366 + $0x8] sm:$0x7]
      %v431 = vcombine.high %v427, %v427
      %432 = vrot.lane.b32.xlu0 %v427, 127
      %v433 = vpop.permute.xlu0 %432
      %434 = vrot.lane.b32.xlu0 %v431, 127
      %v435 = vpop.permute.xlu0 %434
      %436 = vrot.lane.b32.xlu0 %v428, 127
      %v437 = vpop.permute.xlu0 %436
      %v438 = vsel %vm386, %v433, %v435
      %v439 = vsel %vm386, %v435, %v437
      %442 = vst [vmem:[#allocation2 + $0x70] sm:$0x7] %v438
      %443 = vst [vmem:[#allocation2 + $0x78] sm:$0x7] %v439
      %v444 = vld [vmem:[%s224] sm:$0x77]
      %v445 = vld [vmem:[%s224 + $0x8] sm:$0x7]
      %v446 = vsel %vm334, 1, 0
      %v447 = vsel %vm335, 1, 0
      %vm448 = vcmp.eq.s32.totalorder %v446, 1
      %vm449 = vcmp.eq.s32.totalorder %v447, 1
      %v452 = vcombine.high %v444, %v444
      %453 = vrot.lane.b32.xlu0 %v444, 126
      %v454 = vpop.permute.xlu0 %453
      %455 = vrot.lane.b32.xlu0 %v452, 126
      %v456 = vpop.permute.xlu0 %455
      %457 = vrot.lane.b32.xlu0 %v445, 126
      %v458 = vpop.permute.xlu0 %457
      %vm459 = vcmask 1031168
      %v460 = vsel %vm459, %v454, %v456
      %v461 = vsel %vm459, %v456, %v458
      %v464 = vsel %vm448, %v460, 0.0
      %v465 = vsel %vm449, %v461, 0.0
      %466 = vst [vmem:[#allocation2 + $0x80] sm:$0x7] %v464
      %467 = vst [vmem:[#allocation2 + $0x88] sm:$0x7] %v465
      %v468 = vld [vmem:[%s348] sm:$0x77]
      %v469 = vld [vmem:[%s348 + $0x8] sm:$0x7]
      %v472 = vcombine.high %v468, %v468
      %473 = vrot.lane.b32.xlu0 %v468, 126
      %v474 = vpop.permute.xlu0 %473
      %475 = vrot.lane.b32.xlu0 %v472, 126
      %v476 = vpop.permute.xlu0 %475
      %477 = vrot.lane.b32.xlu0 %v469, 126
      %v478 = vpop.permute.xlu0 %477
      %v479 = vsel %vm459, %v474, %v476
      %v480 = vsel %vm459, %v476, %v478
      %v483 = vsel %vm448, %v479, 0.0
      %v484 = vsel %vm449, %v480, 0.0
      %485 = vst [vmem:[#allocation2 + $0x90] sm:$0x7] %v483
      %486 = vst [vmem:[#allocation2 + $0x98] sm:$0x7] %v484
      %v487 = vld [vmem:[%s357] sm:$0x77]
      %v488 = vld [vmem:[%s357 + $0x8] sm:$0x7]
      %v491 = vcombine.high %v487, %v487
      %492 = vrot.lane.b32.xlu0 %v487, 126
      %v493 = vpop.permute.xlu0 %492
      %494 = vrot.lane.b32.xlu0 %v491, 126
      %v495 = vpop.permute.xlu0 %494
      %496 = vrot.lane.b32.xlu0 %v488, 126
      %v497 = vpop.permute.xlu0 %496
      %v498 = vsel %vm459, %v493, %v495
      %v499 = vsel %vm459, %v495, %v497
      %v502 = vsel %vm448, %v498, 0.0
      %v503 = vsel %vm449, %v499, 0.0
      %504 = vst [vmem:[#allocation2 + $0xa0] sm:$0x7] %v502
      %505 = vst [vmem:[#allocation2 + $0xa8] sm:$0x7] %v503
      %v506 = vld [vmem:[%s366] sm:$0x77]
      %v507 = vld [vmem:[%s366 + $0x8] sm:$0x7]
      %v510 = vcombine.high %v506, %v506
      %511 = vrot.lane.b32.xlu0 %v506, 126
      %v512 = vpop.permute.xlu0 %511
      %513 = vrot.lane.b32.xlu0 %v510, 126
      %v514 = vpop.permute.xlu0 %513
      %515 = vrot.lane.b32.xlu0 %v507, 126
      %v516 = vpop.permute.xlu0 %515
      %v517 = vsel %vm459, %v512, %v514
      %v518 = vsel %vm459, %v514, %v516
      %v521 = vsel %vm448, %v517, 0.0
      %v522 = vsel %vm449, %v518, 0.0
      %523 = vst [vmem:[#allocation2 + $0xb0] sm:$0x7] %v521
      %524 = vst [vmem:[#allocation2 + $0xb8] sm:$0x7] %v522
      %v525 = vld [vmem:[%s224] sm:$0x77]
      %v526 = vld [vmem:[%s224 + $0x8] sm:$0x7]
      %v529 = vcombine.high %v525, %v525
      %530 = vrot.lane.b32.xlu0 %v525, 112
      %v531 = vpop.permute.xlu0 %530
      %532 = vrot.lane.b32.xlu0 %v529, 112
      %v533 = vpop.permute.xlu0 %532
      %534 = vrot.lane.b32.xlu0 %v526, 112
      %v535 = vpop.permute.xlu0 %534
      %vm536 = vcmask 916480
      %v537 = vsel %vm536, %v531, %v533
      %v538 = vsel %vm536, %v533, %v535
      %v541 = vsel %vm339, %v537, 0.0
      %v542 = vsel %vm340, %v538, 0.0
      %543 = vst [vmem:[#allocation2 + $0xc0] sm:$0x7] %v541
      %544 = vst [vmem:[#allocation2 + $0xc8] sm:$0x7] %v542
      %v545 = vld [vmem:[%s348] sm:$0x77]
      %v546 = vld [vmem:[%s348 + $0x8] sm:$0x7]
      %v549 = vcombine.high %v545, %v545
      %550 = vrot.lane.b32.xlu0 %v545, 112
      %v551 = vpop.permute.xlu0 %550
      %552 = vrot.lane.b32.xlu0 %v549, 112
      %v553 = vpop.permute.xlu0 %552
      %554 = vrot.lane.b32.xlu0 %v546, 112
      %v555 = vpop.permute.xlu0 %554
      %v556 = vsel %vm536, %v551, %v553
      %v557 = vsel %vm536, %v553, %v555
      %v560 = vsel %vm339, %v556, 0.0
      %v561 = vsel %vm340, %v557, 0.0
      %562 = vst [vmem:[#allocation2 + $0xd0] sm:$0x7] %v560
      %563 = vst [vmem:[#allocation2 + $0xd8] sm:$0x7] %v561
      %v564 = vld [vmem:[%s357] sm:$0x77]
      %v565 = vld [vmem:[%s357 + $0x8] sm:$0x7]
      %v568 = vcombine.high %v564, %v564
      %569 = vrot.lane.b32.xlu0 %v564, 112
      %v570 = vpop.permute.xlu0 %569
      %571 = vrot.lane.b32.xlu0 %v568, 112
      %v572 = vpop.permute.xlu0 %571
      %573 = vrot.lane.b32.xlu0 %v565, 112
      %v574 = vpop.permute.xlu0 %573
      %v575 = vsel %vm536, %v570, %v572
      %v576 = vsel %vm536, %v572, %v574
      %v579 = vsel %vm339, %v575, 0.0
      %v580 = vsel %vm340, %v576, 0.0
      %581 = vst [vmem:[#allocation2 + $0xe0] sm:$0x7] %v579
      %582 = vst [vmem:[#allocation2 + $0xe8] sm:$0x7] %v580
      %v583 = vld [vmem:[%s366] sm:$0x77]
      %v584 = vld [vmem:[%s366 + $0x8] sm:$0x7]
      %v587 = vcombine.high %v583, %v583
      %588 = vrot.lane.b32.xlu0 %v583, 112
      %v589 = vpop.permute.xlu0 %588
      %590 = vrot.lane.b32.xlu0 %v587, 112
      %v591 = vpop.permute.xlu0 %590
      %592 = vrot.lane.b32.xlu0 %v584, 112
      %v593 = vpop.permute.xlu0 %592
      %v594 = vsel %vm536, %v589, %v591
      %v595 = vsel %vm536, %v591, %v593
      %v598 = vsel %vm339, %v594, 0.0
      %v599 = vsel %vm340, %v595, 0.0
      %600 = vst [vmem:[#allocation2 + $0xf0] sm:$0x7] %v598
      %601 = vst [vmem:[#allocation2 + $0xf8] sm:$0x7] %v599
      %v602 = vld [vmem:[%s224] sm:$0x77]
      %v603 = vld [vmem:[%s224 + $0x8] sm:$0x7]
      %v606 = vcombine.high %v602, %v602
      %607 = vrot.lane.b32.xlu0 %v602, 111
      %v608 = vpop.permute.xlu0 %607
      %609 = vrot.lane.b32.xlu0 %v606, 111
      %v610 = vpop.permute.xlu0 %609
      %611 = vrot.lane.b32.xlu0 %v603, 111
      %v612 = vpop.permute.xlu0 %611
      %vm613 = vcmask 908288
      %v614 = vsel %vm613, %v608, %v610
      %v615 = vsel %vm613, %v610, %v612
      %618 = vst [vmem:[#allocation2 + $0x100] sm:$0x7] %v614
      %619 = vst [vmem:[#allocation2 + $0x108] sm:$0x7] %v615
      %v620 = vld [vmem:[%s348] sm:$0x77]
      %v621 = vld [vmem:[%s348 + $0x8] sm:$0x7]
      %v624 = vcombine.high %v620, %v620
      %625 = vrot.lane.b32.xlu0 %v620, 111
      %v626 = vpop.permute.xlu0 %625
      %627 = vrot.lane.b32.xlu0 %v624, 111
      %v628 = vpop.permute.xlu0 %627
      %629 = vrot.lane.b32.xlu0 %v621, 111
      %v630 = vpop.permute.xlu0 %629
      %v631 = vsel %vm613, %v626, %v628
      %v632 = vsel %vm613, %v628, %v630
      %635 = vst [vmem:[#allocation2 + $0x110] sm:$0x7] %v631
      %636 = vst [vmem:[#allocation2 + $0x118] sm:$0x7] %v632
      %v637 = vld [vmem:[%s357] sm:$0x77]
      %v638 = vld [vmem:[%s357 + $0x8] sm:$0x7]
      %v641 = vcombine.high %v637, %v637
      %642 = vrot.lane.b32.xlu0 %v637, 111
      %v643 = vpop.permute.xlu0 %642
      %644 = vrot.lane.b32.xlu0 %v641, 111
      %v645 = vpop.permute.xlu0 %644
      %646 = vrot.lane.b32.xlu0 %v638, 111
      %v647 = vpop.permute.xlu0 %646
      %v648 = vsel %vm613, %v643, %v645
      %v649 = vsel %vm613, %v645, %v647
      %652 = vst [vmem:[#allocation2 + $0x120] sm:$0x7] %v648
      %653 = vst [vmem:[#allocation2 + $0x128] sm:$0x7] %v649
      %v654 = vld [vmem:[%s366] sm:$0x77]
      %v655 = vld [vmem:[%s366 + $0x8] sm:$0x7]
      %v658 = vcombine.high %v654, %v654
      %659 = vrot.lane.b32.xlu0 %v654, 111
      %v660 = vpop.permute.xlu0 %659
      %661 = vrot.lane.b32.xlu0 %v658, 111
      %v662 = vpop.permute.xlu0 %661
      %663 = vrot.lane.b32.xlu0 %v655, 111
      %v664 = vpop.permute.xlu0 %663
      %v665 = vsel %vm613, %v660, %v662
      %v666 = vsel %vm613, %v662, %v664
      %669 = vst [vmem:[#allocation2 + $0x130] sm:$0x7] %v665
      %670 = vst [vmem:[#allocation2 + $0x138] sm:$0x7] %v666
      %v671 = vld [vmem:[%s224] sm:$0x77]
      %v672 = vld [vmem:[%s224 + $0x8] sm:$0x7]
      %v675 = vcombine.high %v671, %v671
      %676 = vrot.lane.b32.xlu0 %v671, 110
      %v677 = vpop.permute.xlu0 %676
      %678 = vrot.lane.b32.xlu0 %v675, 110
      %v679 = vpop.permute.xlu0 %678
      %680 = vrot.lane.b32.xlu0 %v672, 110
      %v681 = vpop.permute.xlu0 %680
      %vm682 = vcmask 900096
      %v683 = vsel %vm682, %v677, %v679
      %v684 = vsel %vm682, %v679, %v681
      %v687 = vsel %vm448, %v683, 0.0
      %v688 = vsel %vm449, %v684, 0.0
      %689 = vst [vmem:[#allocation2 + $0x140] sm:$0x7] %v687
      %690 = vst [vmem:[#allocation2 + $0x148] sm:$0x7] %v688
      %v691 = vld [vmem:[%s348] sm:$0x77]
      %v692 = vld [vmem:[%s348 + $0x8] sm:$0x7]
      %v695 = vcombine.high %v691, %v691
      %696 = vrot.lane.b32.xlu0 %v691, 110
      %v697 = vpop.permute.xlu0 %696
      %698 = vrot.lane.b32.xlu0 %v695, 110
      %v699 = vpop.permute.xlu0 %698
      %700 = vrot.lane.b32.xlu0 %v692, 110
      %v701 = vpop.permute.xlu0 %700
      %v702 = vsel %vm682, %v697, %v699
      %v703 = vsel %vm682, %v699, %v701
      %v706 = vsel %vm448, %v702, 0.0
      %v707 = vsel %vm449, %v703, 0.0
      %708 = vst [vmem:[#allocation2 + $0x150] sm:$0x7] %v706
      %709 = vst [vmem:[#allocation2 + $0x158] sm:$0x7] %v707
      %v710 = vld [vmem:[%s357] sm:$0x77]
      %v711 = vld [vmem:[%s357 + $0x8] sm:$0x7]
      %v714 = vcombine.high %v710, %v710
      %715 = vrot.lane.b32.xlu0 %v710, 110
      %v716 = vpop.permute.xlu0 %715
      %717 = vrot.lane.b32.xlu0 %v714, 110
      %v718 = vpop.permute.xlu0 %717
      %719 = vrot.lane.b32.xlu0 %v711, 110
      %v720 = vpop.permute.xlu0 %719
      %v721 = vsel %vm682, %v716, %v718
      %v722 = vsel %vm682, %v718, %v720
      %v725 = vsel %vm448, %v721, 0.0
      %v726 = vsel %vm449, %v722, 0.0
      %727 = vst [vmem:[#allocation2 + $0x160] sm:$0x7] %v725
      %728 = vst [vmem:[#allocation2 + $0x168] sm:$0x7] %v726
      %v729 = vld [vmem:[%s366] sm:$0x77]
      %v730 = vld [vmem:[%s366 + $0x8] sm:$0x7]
      %v733 = vcombine.high %v729, %v729
      %734 = vrot.lane.b32.xlu0 %v729, 110
      %v735 = vpop.permute.xlu0 %734
      %736 = vrot.lane.b32.xlu0 %v733, 110
      %v737 = vpop.permute.xlu0 %736
      %738 = vrot.lane.b32.xlu0 %v730, 110
      %v739 = vpop.permute.xlu0 %738
      %v740 = vsel %vm682, %v735, %v737
      %v741 = vsel %vm682, %v737, %v739
      %v744 = vsel %vm448, %v740, 0.0
      %v745 = vsel %vm449, %v741, 0.0
      %746 = vst [vmem:[#allocation2 + $0x170] sm:$0x7] %v744
      %747 = vst [vmem:[#allocation2 + $0x178] sm:$0x7] %v745
      %v748 = vld [vmem:[%s224] sm:$0x77]
      %v749 = vld [vmem:[%s224 + $0x8] sm:$0x7]
      %v752 = vcombine.high %v748, %v748
      %753 = vrot.lane.b32.xlu0 %v748, 96
      %v754 = vpop.permute.xlu0 %753
      %755 = vrot.lane.b32.xlu0 %v752, 96
      %v756 = vpop.permute.xlu0 %755
      %757 = vrot.lane.b32.xlu0 %v749, 96
      %v758 = vpop.permute.xlu0 %757
      %vm759 = vcmask 785408
      %v760 = vsel %vm759, %v754, %v756
      %v761 = vsel %vm759, %v756, %v758
      %v764 = vsel %vm339, %v760, 0.0
      %v765 = vsel %vm340, %v761, 0.0
      %766 = vst [vmem:[#allocation2 + $0x180] sm:$0x7] %v764
      %767 = vst [vmem:[#allocation2 + $0x188] sm:$0x7] %v765
      %v768 = vld [vmem:[%s348] sm:$0x77]
      %v769 = vld [vmem:[%s348 + $0x8] sm:$0x7]
      %v772 = vcombine.high %v768, %v768
      %773 = vrot.lane.b32.xlu0 %v768, 96
      %v774 = vpop.permute.xlu0 %773
      %775 = vrot.lane.b32.xlu0 %v772, 96
      %v776 = vpop.permute.xlu0 %775
      %777 = vrot.lane.b32.xlu0 %v769, 96
      %v778 = vpop.permute.xlu0 %777
      %v779 = vsel %vm759, %v774, %v776
      %v780 = vsel %vm759, %v776, %v778
      %v783 = vsel %vm339, %v779, 0.0
      %v784 = vsel %vm340, %v780, 0.0
      %785 = vst [vmem:[#allocation2 + $0x190] sm:$0x7] %v783
      %786 = vst [vmem:[#allocation2 + $0x198] sm:$0x7] %v784
      %v787 = vld [vmem:[%s357] sm:$0x77]
      %v788 = vld [vmem:[%s357 + $0x8] sm:$0x7]
      %v791 = vcombine.high %v787, %v787
      %792 = vrot.lane.b32.xlu0 %v787, 96
      %v793 = vpop.permute.xlu0 %792
      %794 = vrot.lane.b32.xlu0 %v791, 96
      %v795 = vpop.permute.xlu0 %794
      %796 = vrot.lane.b32.xlu0 %v788, 96
      %v797 = vpop.permute.xlu0 %796
      %v798 = vsel %vm759, %v793, %v795
      %v799 = vsel %vm759, %v795, %v797
      %v802 = vsel %vm339, %v798, 0.0
      %v803 = vsel %vm340, %v799, 0.0
      %804 = vst [vmem:[#allocation2 + $0x1a0] sm:$0x7] %v802
      %805 = vst [vmem:[#allocation2 + $0x1a8] sm:$0x7] %v803
      %v806 = vld [vmem:[%s366] sm:$0x77]
      %v807 = vld [vmem:[%s366 + $0x8] sm:$0x7]
      %v810 = vcombine.high %v806, %v806
      %811 = vrot.lane.b32.xlu0 %v806, 96
      %v812 = vpop.permute.xlu0 %811
      %813 = vrot.lane.b32.xlu0 %v810, 96
      %v814 = vpop.permute.xlu0 %813
      %815 = vrot.lane.b32.xlu0 %v807, 96
      %v816 = vpop.permute.xlu0 %815
      %v817 = vsel %vm759, %v812, %v814
      %v818 = vsel %vm759, %v814, %v816
      %v821 = vsel %vm339, %v817, 0.0
      %v822 = vsel %vm340, %v818, 0.0
      %823 = vst [vmem:[#allocation2 + $0x1b0] sm:$0x7] %v821
      %824 = vst [vmem:[#allocation2 + $0x1b8] sm:$0x7] %v822
      %v825 = vld [vmem:[%s224] sm:$0x77]
      %v826 = vld [vmem:[%s224 + $0x8] sm:$0x7]
      %v829 = vcombine.high %v825, %v825
      %830 = vrot.lane.b32.xlu0 %v825, 95
      %v831 = vpop.permute.xlu0 %830
      %832 = vrot.lane.b32.xlu0 %v829, 95
      %v833 = vpop.permute.xlu0 %832
      %834 = vrot.lane.b32.xlu0 %v826, 95
      %v835 = vpop.permute.xlu0 %834
      %vm836 = vcmask 777216
      %v837 = vsel %vm836, %v831, %v833
      %v838 = vsel %vm836, %v833, %v835
      %841 = vst [vmem:[#allocation2 + $0x1c0] sm:$0x7] %v837
      %842 = vst [vmem:[#allocation2 + $0x1c8] sm:$0x7] %v838
      %v843 = vld [vmem:[%s348] sm:$0x77]
      %v844 = vld [vmem:[%s348 + $0x8] sm:$0x7]
      %v847 = vcombine.high %v843, %v843
      %848 = vrot.lane.b32.xlu0 %v843, 95
      %v849 = vpop.permute.xlu0 %848
      %850 = vrot.lane.b32.xlu0 %v847, 95
      %v851 = vpop.permute.xlu0 %850
      %852 = vrot.lane.b32.xlu0 %v844, 95
      %v853 = vpop.permute.xlu0 %852
      %v854 = vsel %vm836, %v849, %v851
      %v855 = vsel %vm836, %v851, %v853
      %858 = vst [vmem:[#allocation2 + $0x1d0] sm:$0x7] %v854
      %859 = vst [vmem:[#allocation2 + $0x1d8] sm:$0x7] %v855
      %v860 = vld [vmem:[%s357] sm:$0x77]
      %v861 = vld [vmem:[%s357 + $0x8] sm:$0x7]
      %v864 = vcombine.high %v860, %v860
      %865 = vrot.lane.b32.xlu0 %v860, 95
      %v866 = vpop.permute.xlu0 %865
      %867 = vrot.lane.b32.xlu0 %v864, 95
      %v868 = vpop.permute.xlu0 %867
      %869 = vrot.lane.b32.xlu0 %v861, 95
      %v870 = vpop.permute.xlu0 %869
      %v871 = vsel %vm836, %v866, %v868
      %v872 = vsel %vm836, %v868, %v870
      %875 = vst [vmem:[#allocation2 + $0x1e0] sm:$0x7] %v871
      %876 = vst [vmem:[#allocation2 + $0x1e8] sm:$0x7] %v872
      %v877 = vld [vmem:[%s366] sm:$0x77]
      %v878 = vld [vmem:[%s366 + $0x8] sm:$0x7]
      %v881 = vcombine.high %v877, %v877
      %882 = vrot.lane.b32.xlu0 %v877, 95
      %v883 = vpop.permute.xlu0 %882
      %884 = vrot.lane.b32.xlu0 %v881, 95
      %v885 = vpop.permute.xlu0 %884
      %886 = vrot.lane.b32.xlu0 %v878, 95
      %v887 = vpop.permute.xlu0 %886
      %v888 = vsel %vm836, %v883, %v885
      %v889 = vsel %vm836, %v885, %v887
      %892 = vst [vmem:[#allocation2 + $0x1f0] sm:$0x7] %v888
      %893 = vst [vmem:[#allocation2 + $0x1f8] sm:$0x7] %v889
      %v894 = vld [vmem:[%s224] sm:$0x77]
      %v895 = vld [vmem:[%s224 + $0x8] sm:$0x7]
      %v898 = vcombine.high %v894, %v894
      %899 = vrot.lane.b32.xlu0 %v894, 94
      %v900 = vpop.permute.xlu0 %899
      %901 = vrot.lane.b32.xlu0 %v898, 94
      %v902 = vpop.permute.xlu0 %901
      %903 = vrot.lane.b32.xlu0 %v895, 94
      %v904 = vpop.permute.xlu0 %903
      %vm905 = vcmask 769024
      %v906 = vsel %vm905, %v900, %v902
      %v907 = vsel %vm905, %v902, %v904
      %v910 = vsel %vm448, %v906, 0.0
      %v911 = vsel %vm449, %v907, 0.0
      %912 = vst [vmem:[#allocation2 + $0x200] sm:$0x7] %v910
      %913 = vst [vmem:[#allocation2 + $0x208] sm:$0x7] %v911
      %v914 = vld [vmem:[%s348] sm:$0x77]
      %v915 = vld [vmem:[%s348 + $0x8] sm:$0x7]
      %v918 = vcombine.high %v914, %v914
      %919 = vrot.lane.b32.xlu0 %v914, 94
      %v920 = vpop.permute.xlu0 %919
      %921 = vrot.lane.b32.xlu0 %v918, 94
      %v922 = vpop.permute.xlu0 %921
      %923 = vrot.lane.b32.xlu0 %v915, 94
      %v924 = vpop.permute.xlu0 %923
      %v925 = vsel %vm905, %v920, %v922
      %v926 = vsel %vm905, %v922, %v924
      %v929 = vsel %vm448, %v925, 0.0
      %v930 = vsel %vm449, %v926, 0.0
      %931 = vst [vmem:[#allocation2 + $0x210] sm:$0x7] %v929
      %932 = vst [vmem:[#allocation2 + $0x218] sm:$0x7] %v930
      %v933 = vld [vmem:[%s357] sm:$0x77]
      %v934 = vld [vmem:[%s357 + $0x8] sm:$0x7]
      %v937 = vcombine.high %v933, %v933
      %938 = vrot.lane.b32.xlu0 %v933, 94
      %v939 = vpop.permute.xlu0 %938
      %940 = vrot.lane.b32.xlu0 %v937, 94
      %v941 = vpop.permute.xlu0 %940
      %942 = vrot.lane.b32.xlu0 %v934, 94
      %v943 = vpop.permute.xlu0 %942
      %v944 = vsel %vm905, %v939, %v941
      %v945 = vsel %vm905, %v941, %v943
      %v948 = vsel %vm448, %v944, 0.0
      %v949 = vsel %vm449, %v945, 0.0
      %950 = vst [vmem:[#allocation2 + $0x220] sm:$0x7] %v948
      %951 = vst [vmem:[#allocation2 + $0x228] sm:$0x7] %v949
      %v952 = vld [vmem:[%s366] sm:$0x77]
      %v953 = vld [vmem:[%s366 + $0x8] sm:$0x7]
      %v956 = vcombine.high %v952, %v952
      %957 = vrot.lane.b32.xlu0 %v952, 94
      %v958 = vpop.permute.xlu0 %957
      %959 = vrot.lane.b32.xlu0 %v956, 94
      %v960 = vpop.permute.xlu0 %959
      %961 = vrot.lane.b32.xlu0 %v953, 94
      %v962 = vpop.permute.xlu0 %961
      %v963 = vsel %vm905, %v958, %v960
      %v964 = vsel %vm905, %v960, %v962
      %v967 = vsel %vm448, %v963, 0.0
      %v968 = vsel %vm449, %v964, 0.0
      %969 = vst [vmem:[#allocation2 + $0x230] sm:$0x7] %v967
      %970 = vst [vmem:[#allocation2 + $0x238] sm:$0x7] %v968
      %v971 = vld [vmem:[%s1] sm:$0xff]
      %v972 = vld [vmem:[%s1 + $0x8] sm:$0xff]
      %v973 = vld [vmem:[%s1 + $0x10] sm:$0xff]
      %v974 = vld [vmem:[%s1 + $0x18] sm:$0xff]
      %v975 = vld [vmem:[#allocation2] sm:$0xff]
      %v976 = vld [vmem:[#allocation2 + $0x8] sm:$0xff]
      %v977 = vld [vmem:[#allocation2 + $0x10] sm:$0xff]
      %v978 = vld [vmem:[#allocation2 + $0x18] sm:$0xff]
      %v979 = vld [vmem:[#allocation2 + $0x20] sm:$0xff]
      %v980 = vld [vmem:[#allocation2 + $0x28] sm:$0xff]
      %v981 = vld [vmem:[#allocation2 + $0x30] sm:$0xff]
      %v982 = vld [vmem:[#allocation2 + $0x38] sm:$0xff]
      %v983 = vld [vmem:[#allocation2 + $0x40] sm:$0xff]
      %v984 = vld [vmem:[#allocation2 + $0x48] sm:$0xff]
      %v985 = vld [vmem:[#allocation2 + $0x50] sm:$0xff]
      %v986 = vld [vmem:[#allocation2 + $0x58] sm:$0xff]
      %v987 = vld [vmem:[#allocation2 + $0x60] sm:$0xff]
      %v988 = vld [vmem:[#allocation2 + $0x68] sm:$0xff]
      %v989 = vld [vmem:[#allocation2 + $0x70] sm:$0xff]
      %v990 = vld [vmem:[#allocation2 + $0x78] sm:$0xff]
      %v991 = vld [vmem:[#allocation2 + $0x80] sm:$0xff]
      %v992 = vld [vmem:[#allocation2 + $0x88] sm:$0xff]
      %v993 = vld [vmem:[#allocation2 + $0x90] sm:$0xff]
      %v994 = vld [vmem:[#allocation2 + $0x98] sm:$0xff]
      %v995 = vld [vmem:[#allocation2 + $0xa0] sm:$0xff]
      %v996 = vld [vmem:[#allocation2 + $0xa8] sm:$0xff]
      %v997 = vld [vmem:[#allocation2 + $0xb0] sm:$0xff]
      %v998 = vld [vmem:[#allocation2 + $0xb8] sm:$0xff]
      %v999 = vld [vmem:[#allocation2 + $0xc0] sm:$0xff]
      %v1000 = vld [vmem:[#allocation2 + $0xc8] sm:$0xff]
      %v1001 = vld [vmem:[#allocation2 + $0xd0] sm:$0xff]
      %v1002 = vld [vmem:[#allocation2 + $0xd8] sm:$0xff]
      %v1003 = vld [vmem:[#allocation2 + $0xe0] sm:$0xff]
      %v1004 = vld [vmem:[#allocation2 + $0xe8] sm:$0xff]
      %v1005 = vld [vmem:[#allocation2 + $0xf0] sm:$0xff]
      %v1006 = vld [vmem:[#allocation2 + $0xf8] sm:$0xff]
      %v1007 = vld [vmem:[#allocation2 + $0x100] sm:$0xff]
      %v1008 = vld [vmem:[#allocation2 + $0x108] sm:$0xff]
      %v1009 = vld [vmem:[#allocation2 + $0x110] sm:$0xff]
      %v1010 = vld [vmem:[#allocation2 + $0x118] sm:$0xff]
      %v1011 = vld [vmem:[#allocation2 + $0x120] sm:$0xff]
      %v1012 = vld [vmem:[#allocation2 + $0x128] sm:$0xff]
      %v1013 = vld [vmem:[#allocation2 + $0x130] sm:$0xff]
      %v1014 = vld [vmem:[#allocation2 + $0x138] sm:$0xff]
      %v1015 = vld [vmem:[#allocation2 + $0x140] sm:$0xff]
      %v1016 = vld [vmem:[#allocation2 + $0x148] sm:$0xff]
      %v1017 = vld [vmem:[#allocation2 + $0x150] sm:$0xff]
      %v1018 = vld [vmem:[#allocation2 + $0x158] sm:$0xff]
      %v1019 = vld [vmem:[#allocation2 + $0x160] sm:$0xff]
      %v1020 = vld [vmem:[#allocation2 + $0x168] sm:$0xff]
      %v1021 = vld [vmem:[#allocation2 + $0x170] sm:$0xff]
      %v1022 = vld [vmem:[#allocation2 + $0x178] sm:$0xff]
      %v1023 = vld [vmem:[#allocation2 + $0x180] sm:$0xff]
      %v1024 = vld [vmem:[#allocation2 + $0x188] sm:$0xff]
      %v1025 = vld [vmem:[#allocation2 + $0x190] sm:$0xff]
      %v1026 = vld [vmem:[#allocation2 + $0x198] sm:$0xff]
      %v1027 = vld [vmem:[#allocation2 + $0x1a0] sm:$0xff]
      %v1028 = vld [vmem:[#allocation2 + $0x1a8] sm:$0xff]
      %v1029 = vld [vmem:[#allocation2 + $0x1b0] sm:$0xff]
      %v1030 = vld [vmem:[#allocation2 + $0x1b8] sm:$0xff]
      %v1031 = vld [vmem:[#allocation2 + $0x1c0] sm:$0xff]
      %v1032 = vld [vmem:[#allocation2 + $0x1c8] sm:$0xff]
      %v1033 = vld [vmem:[#allocation2 + $0x1d0] sm:$0xff]
      %v1034 = vld [vmem:[#allocation2 + $0x1d8] sm:$0xff]
      %v1035 = vld [vmem:[#allocation2 + $0x1e0] sm:$0xff]
      %v1036 = vld [vmem:[#allocation2 + $0x1e8] sm:$0xff]
      %v1037 = vld [vmem:[#allocation2 + $0x1f0] sm:$0xff]
      %v1038 = vld [vmem:[#allocation2 + $0x1f8] sm:$0xff]
      %v1039 = vld [vmem:[#allocation2 + $0x200] sm:$0xff]
      %v1040 = vld [vmem:[#allocation2 + $0x208] sm:$0xff]
      %v1041 = vld [vmem:[#allocation2 + $0x210] sm:$0xff]
      %v1042 = vld [vmem:[#allocation2 + $0x218] sm:$0xff]
      %v1043 = vld [vmem:[#allocation2 + $0x220] sm:$0xff]
      %v1044 = vld [vmem:[#allocation2 + $0x228] sm:$0xff]
      %v1045 = vld [vmem:[#allocation2 + $0x230] sm:$0xff]
      %v1046 = vld [vmem:[#allocation2 + $0x238] sm:$0xff]
      %v1047 = vld [vmem:[%s2] sm:$0xff]
      %v1048 = vld [vmem:[%s2 + $0x8] sm:$0xff]
      %v1049 = vld [vmem:[%s2 + $0x10] sm:$0xff]
      %v1050 = vld [vmem:[%s2 + $0x18] sm:$0xff]
      %1052 = vset.pattern.permute.xlu0 0
      %1053 = vperm.xlu0 %1052, %v1047
      %v1054 = vpop.permute.xlu0 %1053
      %1057 = vset.pattern.permute.xlu0 0
      %1058 = vperm.xlu0 %1057, %v1048
      %v1059 = vpop.permute.xlu0 %1058
      %1062 = vset.pattern.permute.xlu0 0
      %1063 = vperm.xlu0 %1062, %v1049
      %v1064 = vpop.permute.xlu0 %1063
      %1067 = vset.pattern.permute.xlu0 0
      %1068 = vperm.xlu0 %1067, %v1050
      %v1069 = vpop.permute.xlu0 %1068
      %vm1071 = vcmask 588800
      %v1073 = vsel %vm1071, %v971, 0
      %v1076 = vsel %vm1071, %v972, 0
      %v1079 = vsel %vm1071, %v973, 0
      %v1082 = vsel %vm1071, %v974, 0
      %1084 = vmatprep.subr.mxu0 %v976
      %1085 = vmatpush1.msra.mxu0 %v975
      %1086 = vmatprep.subr.mxu0 %v984
      %1087 = vmatpush1.msra.mxu0 %v983
      %1088 = vmatprep.subr.mxu0 %v992
      %1089 = vmatpush1.msra.mxu0 %v991
      %1090 = vmatprep.subr.mxu0 %v1000
      %1091 = vmatpush1.msra.mxu0 %v999
      %1092 = vmatprep.subr.mxu0 %v1008
      %1093 = vmatpush1.msra.mxu0 %v1007
      %1094 = vmatprep.subr.mxu0 %v1016
      %1095 = vmatpush1.msra.mxu0 %v1015
      %1096 = vmatprep.subr.mxu0 %v1024
      %1097 = vmatpush1.msra.mxu0 %v1023
      %1098 = vmatprep.subr.mxu0 %v1032
      %1099 = vmatpush1.msra.mxu0 %v1031
      %1100 = vmatprep.subr.mxu0 %v1040
      %1101 = vmatpush1.msra.mxu0 %v1039
      %1102 = vmatprep.subr.mxu0 0.0
      %1103 = vmatpush1.msra.mxu0 0.0
      %1104 = vmatprep.subr.mxu0 0.0
      %1105 = vmatpush1.msra.mxu0 0.0
      %1106 = vmatprep.subr.mxu0 0.0
      %1107 = vmatpush1.msra.mxu0 0.0
      %1108 = vmatprep.subr.mxu0 0.0
      %1109 = vmatpush1.msra.mxu0 0.0
      %1110 = vmatprep.subr.mxu0 0.0
      %1111 = vmatpush1.msra.mxu0 0.0
      %1112 = vmatprep.subr.mxu0 0.0
      %1113 = vmatpush1.msra.mxu0 0.0
      %1114 = vmatprep.subr.mxu0 0.0
      %1115 = vmatpush1.msra.mxu0 0.0
      %1116 = vmatprep.subr.mxu0 0.0
      %1117 = vmatpush1.msra.mxu0 0.0
      %1118 = vmatprep.subr.mxu0 0.0
      %1119 = vmatpush1.msra.mxu0 0.0
      %1120 = vmatprep.subr.mxu0 0.0
      %1121 = vmatpush1.msra.mxu0 0.0
      %1122 = vmatprep.subr.mxu0 0.0
      %1123 = vmatpush1.msra.mxu0 0.0
      %1124 = vmatprep.subr.mxu0 0.0
      %1125 = vmatpush1.msra.mxu0 0.0
      %1126 = vmatprep.subr.mxu0 0.0
      %1127 = vmatpush1.msra.mxu0 0.0
      %1128 = vmatprep.subr.mxu0 0.0
      %1129 = vmatpush1.msra.mxu0 0.0
      %1130 = vmatprep.subr.mxu0 0.0
      %1131 = vmatpush1.msra.mxu0 0.0
      %1132 = vmatprep.subr.mxu0 0.0
      %1133 = vmatpush1.msra.mxu0 0.0
      %1134 = vmatprep.subr.mxu0 0.0
      %1135 = vmatpush1.msra.mxu0 0.0
      %1136 = vmatprep.subr.mxu0 0.0
      %1137 = vmatpush1.msra.mxu0 0.0
      %1138 = vmatprep.subr.mxu0 0.0
      %1139 = vmatpush1.msra.mxu0 0.0
      %1140 = vmatprep.subr.mxu0 0.0
      %1141 = vmatpush1.msra.mxu0 0.0
      %1142 = vmatprep.subr.mxu0 0.0
      %1143 = vmatpush1.msra.mxu0 0.0
      %1144 = vmatprep.subr.mxu0 0.0
      %1145 = vmatpush1.msra.mxu0 0.0
      %1146 = vmatprep.subr.mxu0 0.0
      %1147 = vmatpush1.msra.mxu0 0.0
      %1148 = vmatprep.mubr.f32.mxu0 0.0
      %1149 = vmatmul.mubr.f32.gmra.mrb[0].mxu0 %v1073
      %v1150 = vpop.f32.mrb[0].mxu0
      %v1151 = vadd.f32 %v1054, %v1150
      %v1152 = vpop.f32.mrb[0].mxu0
      %v1153 = vadd.f32 %v1054, %v1152
      %1154 = vmatprep.mubr.f32.mxu0 0.0
      %1155 = vmatmul.mubr.f32.gmra.mrb[0].mxu0 %v1076
      %v1156 = vpop.f32.mrb[0].mxu0
      %v1157 = vadd.f32 %v1059, %v1156
      %v1158 = vpop.f32.mrb[0].mxu0
      %v1159 = vadd.f32 %v1059, %v1158
      %1160 = vmatprep.mubr.f32.mxu0 0.0
      %1161 = vmatmul.mubr.f32.gmra.mrb[0].mxu0 %v1079
      %v1162 = vpop.f32.mrb[0].mxu0
      %v1163 = vadd.f32 %v1064, %v1162
      %v1164 = vpop.f32.mrb[0].mxu0
      %v1165 = vadd.f32 %v1064, %v1164
      %1166 = vmatprep.mubr.f32.mxu0 0.0
      %1167 = vmatmul.mubr.f32.gmra.mrb[0].mxu0 %v1082
      %v1168 = vpop.f32.mrb[0].mxu0
      %v1169 = vadd.f32 %v1069, %v1168
      %v1170 = vpop.f32.mrb[0].mxu0
      %v1171 = vadd.f32 %v1069, %v1170
      %1172 = vdwg.mxu0
      %1173 = vmatprep.subr.mxu0 %v978
      %1174 = vmatpush1.msra.mxu0 %v977
      %1175 = vmatprep.subr.mxu0 %v986
      %1176 = vmatpush1.msra.mxu0 %v985
      %1177 = vmatprep.subr.mxu0 %v994
      %1178 = vmatpush1.msra.mxu0 %v993
      %1179 = vmatprep.subr.mxu0 %v1002
      %1180 = vmatpush1.msra.mxu0 %v1001
      %1181 = vmatprep.subr.mxu0 %v1010
      %1182 = vmatpush1.msra.mxu0 %v1009
      %1183 = vmatprep.subr.mxu0 %v1018
      %1184 = vmatpush1.msra.mxu0 %v1017
      %1185 = vmatprep.subr.mxu0 %v1026
      %1186 = vmatpush1.msra.mxu0 %v1025
      %1187 = vmatprep.subr.mxu0 %v1034
      %1188 = vmatpush1.msra.mxu0 %v1033
      %1189 = vmatprep.subr.mxu0 %v1042
      %1190 = vmatpush1.msra.mxu0 %v1041
      %1191 = vmatprep.subr.mxu0 0.0
      %1192 = vmatpush1.msra.mxu0 0.0
      %1193 = vmatprep.subr.mxu0 0.0
      %1194 = vmatpush1.msra.mxu0 0.0
      %1195 = vmatprep.subr.mxu0 0.0
      %1196 = vmatpush1.msra.mxu0 0.0
      %1197 = vmatprep.subr.mxu0 0.0
      %1198 = vmatpush1.msra.mxu0 0.0
      %1199 = vmatprep.subr.mxu0 0.0
      %1200 = vmatpush1.msra.mxu0 0.0
      %1201 = vmatprep.subr.mxu0 0.0
      %1202 = vmatpush1.msra.mxu0 0.0
      %1203 = vmatprep.subr.mxu0 0.0
      %1204 = vmatpush1.msra.mxu0 0.0
      %1205 = vmatprep.subr.mxu0 0.0
      %1206 = vmatpush1.msra.mxu0 0.0
      %1207 = vmatprep.subr.mxu0 0.0
      %1208 = vmatpush1.msra.mxu0 0.0
      %1209 = vmatprep.subr.mxu0 0.0
      %1210 = vmatpush1.msra.mxu0 0.0
      %1211 = vmatprep.subr.mxu0 0.0
      %1212 = vmatpush1.msra.mxu0 0.0
      %1213 = vmatprep.subr.mxu0 0.0
      %1214 = vmatpush1.msra.mxu0 0.0
      %1215 = vmatprep.subr.mxu0 0.0
      %1216 = vmatpush1.msra.mxu0 0.0
      %1217 = vmatprep.subr.mxu0 0.0
      %1218 = vmatpush1.msra.mxu0 0.0
      %1219 = vmatprep.subr.mxu0 0.0
      %1220 = vmatpush1.msra.mxu0 0.0
      %1221 = vmatprep.subr.mxu0 0.0
      %1222 = vmatpush1.msra.mxu0 0.0
      %1223 = vmatprep.subr.mxu0 0.0
      %1224 = vmatpush1.msra.mxu0 0.0
      %1225 = vmatprep.subr.mxu0 0.0
      %1226 = vmatpush1.msra.mxu0 0.0
      %1227 = vmatprep.subr.mxu0 0.0
      %1228 = vmatpush1.msra.mxu0 0.0
      %1229 = vmatprep.subr.mxu0 0.0
      %1230 = vmatpush1.msra.mxu0 0.0
      %1231 = vmatprep.subr.mxu0 0.0
      %1232 = vmatpush1.msra.mxu0 0.0
      %1233 = vmatprep.subr.mxu0 0.0
      %1234 = vmatpush1.msra.mxu0 0.0
      %1235 = vmatprep.subr.mxu0 0.0
      %1236 = vmatpush1.msra.mxu0 0.0
      %1237 = vmatprep.mubr.f32.mxu0 0.0
      %1238 = vmatmul.mubr.f32.gmra.mrb[0].mxu0 %v1073
      %v1239 = vpop.f32.mrb[0].mxu0
      %v1240 = vadd.f32 %v1054, %v1239
      %v1241 = vpop.f32.mrb[0].mxu0
      %v1242 = vadd.f32 %v1054, %v1241
      %1243 = vmatprep.mubr.f32.mxu0 0.0
      %1244 = vmatmul.mubr.f32.gmra.mrb[0].mxu0 %v1076
      %v1245 = vpop.f32.mrb[0].mxu0
      %v1246 = vadd.f32 %v1059, %v1245
      %v1247 = vpop.f32.mrb[0].mxu0
      %v1248 = vadd.f32 %v1059, %v1247
      %1249 = vmatprep.mubr.f32.mxu0 0.0
      %1250 = vmatmul.mubr.f32.gmra.mrb[0].mxu0 %v1079
      %v1251 = vpop.f32.mrb[0].mxu0
      %v1252 = vadd.f32 %v1064, %v1251
      %v1253 = vpop.f32.mrb[0].mxu0
      %v1254 = vadd.f32 %v1064, %v1253
      %1255 = vmatprep.mubr.f32.mxu0 0.0
      %1256 = vmatmul.mubr.f32.gmra.mrb[0].mxu0 %v1082
      %v1257 = vpop.f32.mrb[0].mxu0
      %v1258 = vadd.f32 %v1069, %v1257
      %v1259 = vpop.f32.mrb[0].mxu0
      %v1260 = vadd.f32 %v1069, %v1259
      %1261 = vdwg.mxu0
      %1262 = vmatprep.subr.mxu0 %v980
      %1263 = vmatpush1.msra.mxu0 %v979
      %1264 = vmatprep.subr.mxu0 %v988
      %1265 = vmatpush1.msra.mxu0 %v987
      %1266 = vmatprep.subr.mxu0 %v996
      %1267 = vmatpush1.msra.mxu0 %v995
      %1268 = vmatprep.subr.mxu0 %v1004
      %1269 = vmatpush1.msra.mxu0 %v1003
      %1270 = vmatprep.subr.mxu0 %v1012
      %1271 = vmatpush1.msra.mxu0 %v1011
      %1272 = vmatprep.subr.mxu0 %v1020
      %1273 = vmatpush1.msra.mxu0 %v1019
      %1274 = vmatprep.subr.mxu0 %v1028
      %1275 = vmatpush1.msra.mxu0 %v1027
      %1276 = vmatprep.subr.mxu0 %v1036
      %1277 = vmatpush1.msra.mxu0 %v1035
      %1278 = vmatprep.subr.mxu0 %v1044
      %1279 = vmatpush1.msra.mxu0 %v1043
      %1280 = vmatprep.subr.mxu0 0.0
      %1281 = vmatpush1.msra.mxu0 0.0
      %1282 = vmatprep.subr.mxu0 0.0
      %1283 = vmatpush1.msra.mxu0 0.0
      %1284 = vmatprep.subr.mxu0 0.0
      %1285 = vmatpush1.msra.mxu0 0.0
      %1286 = vmatprep.subr.mxu0 0.0
      %1287 = vmatpush1.msra.mxu0 0.0
      %1288 = vmatprep.subr.mxu0 0.0
      %1289 = vmatpush1.msra.mxu0 0.0
      %1290 = vmatprep.subr.mxu0 0.0
      %1291 = vmatpush1.msra.mxu0 0.0
      %1292 = vmatprep.subr.mxu0 0.0
      %1293 = vmatpush1.msra.mxu0 0.0
      %1294 = vmatprep.subr.mxu0 0.0
      %1295 = vmatpush1.msra.mxu0 0.0
      %1296 = vmatprep.subr.mxu0 0.0
      %1297 = vmatpush1.msra.mxu0 0.0
      %1298 = vmatprep.subr.mxu0 0.0
      %1299 = vmatpush1.msra.mxu0 0.0
      %1300 = vmatprep.subr.mxu0 0.0
      %1301 = vmatpush1.msra.mxu0 0.0
      %1302 = vmatprep.subr.mxu0 0.0
      %1303 = vmatpush1.msra.mxu0 0.0
      %1304 = vmatprep.subr.mxu0 0.0
      %1305 = vmatpush1.msra.mxu0 0.0
      %1306 = vmatprep.subr.mxu0 0.0
      %1307 = vmatpush1.msra.mxu0 0.0
      %1308 = vmatprep.subr.mxu0 0.0
      %1309 = vmatpush1.msra.mxu0 0.0
      %1310 = vmatprep.subr.mxu0 0.0
      %1311 = vmatpush1.msra.mxu0 0.0
      %1312 = vmatprep.subr.mxu0 0.0
      %1313 = vmatpush1.msra.mxu0 0.0
      %1314 = vmatprep.subr.mxu0 0.0
      %1315 = vmatpush1.msra.mxu0 0.0
      %1316 = vmatprep.subr.mxu0 0.0
      %1317 = vmatpush1.msra.mxu0 0.0
      %1318 = vmatprep.subr.mxu0 0.0
      %1319 = vmatpush1.msra.mxu0 0.0
      %1320 = vmatprep.subr.mxu0 0.0
      %1321 = vmatpush1.msra.mxu0 0.0
      %1322 = vmatprep.subr.mxu0 0.0
      %1323 = vmatpush1.msra.mxu0 0.0
      %1324 = vmatprep.subr.mxu0 0.0
      %1325 = vmatpush1.msra.mxu0 0.0
      %1326 = vmatprep.mubr.f32.mxu0 0.0
      %1327 = vmatmul.mubr.f32.gmra.mrb[0].mxu0 %v1073
      %v1328 = vpop.f32.mrb[0].mxu0
      %v1329 = vadd.f32 %v1054, %v1328
      %v1330 = vpop.f32.mrb[0].mxu0
      %v1331 = vadd.f32 %v1054, %v1330
      %1332 = vmatprep.mubr.f32.mxu0 0.0
      %1333 = vmatmul.mubr.f32.gmra.mrb[0].mxu0 %v1076
      %v1334 = vpop.f32.mrb[0].mxu0
      %v1335 = vadd.f32 %v1059, %v1334
      %v1336 = vpop.f32.mrb[0].mxu0
      %v1337 = vadd.f32 %v1059, %v1336
      %1338 = vmatprep.mubr.f32.mxu0 0.0
      %1339 = vmatmul.mubr.f32.gmra.mrb[0].mxu0 %v1079
      %v1340 = vpop.f32.mrb[0].mxu0
      %v1341 = vadd.f32 %v1064, %v1340
      %v1342 = vpop.f32.mrb[0].mxu0
      %v1343 = vadd.f32 %v1064, %v1342
      %1344 = vmatprep.mubr.f32.mxu0 0.0
      %1345 = vmatmul.mubr.f32.gmra.mrb[0].mxu0 %v1082
      %v1346 = vpop.f32.mrb[0].mxu0
      %v1347 = vadd.f32 %v1069, %v1346
      %v1348 = vpop.f32.mrb[0].mxu0
      %v1349 = vadd.f32 %v1069, %v1348
      %1350 = vdwg.mxu0
      %1351 = vmatprep.subr.mxu0 %v982
      %1352 = vmatpush1.msra.mxu0 %v981
      %1353 = vmatprep.subr.mxu0 %v990
      %1354 = vmatpush1.msra.mxu0 %v989
      %1355 = vmatprep.subr.mxu0 %v998
      %1356 = vmatpush1.msra.mxu0 %v997
      %1357 = vmatprep.subr.mxu0 %v1006
      %1358 = vmatpush1.msra.mxu0 %v1005
      %1359 = vmatprep.subr.mxu0 %v1014
      %1360 = vmatpush1.msra.mxu0 %v1013
      %1361 = vmatprep.subr.mxu0 %v1022
      %1362 = vmatpush1.msra.mxu0 %v1021
      %1363 = vmatprep.subr.mxu0 %v1030
      %1364 = vmatpush1.msra.mxu0 %v1029
      %1365 = vmatprep.subr.mxu0 %v1038
      %1366 = vmatpush1.msra.mxu0 %v1037
      %1367 = vmatprep.subr.mxu0 %v1046
      %1368 = vmatpush1.msra.mxu0 %v1045
      %1369 = vmatprep.subr.mxu0 0.0
      %1370 = vmatpush1.msra.mxu0 0.0
      %1371 = vmatprep.subr.mxu0 0.0
      %1372 = vmatpush1.msra.mxu0 0.0
      %1373 = vmatprep.subr.mxu0 0.0
      %1374 = vmatpush1.msra.mxu0 0.0
      %1375 = vmatprep.subr.mxu0 0.0
      %1376 = vmatpush1.msra.mxu0 0.0
      %1377 = vmatprep.subr.mxu0 0.0
      %1378 = vmatpush1.msra.mxu0 0.0
      %1379 = vmatprep.subr.mxu0 0.0
      %1380 = vmatpush1.msra.mxu0 0.0
      %1381 = vmatprep.subr.mxu0 0.0
      %1382 = vmatpush1.msra.mxu0 0.0
      %1383 = vmatprep.subr.mxu0 0.0
      %1384 = vmatpush1.msra.mxu0 0.0
      %1385 = vmatprep.subr.mxu0 0.0
      %1386 = vmatpush1.msra.mxu0 0.0
      %1387 = vmatprep.subr.mxu0 0.0
      %1388 = vmatpush1.msra.mxu0 0.0
      %1389 = vmatprep.subr.mxu0 0.0
      %1390 = vmatpush1.msra.mxu0 0.0
      %1391 = vmatprep.subr.mxu0 0.0
      %1392 = vmatpush1.msra.mxu0 0.0
      %1393 = vmatprep.subr.mxu0 0.0
      %1394 = vmatpush1.msra.mxu0 0.0
      %1395 = vmatprep.subr.mxu0 0.0
      %1396 = vmatpush1.msra.mxu0 0.0
      %1397 = vmatprep.subr.mxu0 0.0
      %1398 = vmatpush1.msra.mxu0 0.0
      %1399 = vmatprep.subr.mxu0 0.0
      %1400 = vmatpush1.msra.mxu0 0.0
      %1401 = vmatprep.subr.mxu0 0.0
      %1402 = vmatpush1.msra.mxu0 0.0
      %1403 = vmatprep.subr.mxu0 0.0
      %1404 = vmatpush1.msra.mxu0 0.0
      %1405 = vmatprep.subr.mxu0 0.0
      %1406 = vmatpush1.msra.mxu0 0.0
      %1407 = vmatprep.subr.mxu0 0.0
      %1408 = vmatpush1.msra.mxu0 0.0
      %1409 = vmatprep.subr.mxu0 0.0
      %1410 = vmatpush1.msra.mxu0 0.0
      %1411 = vmatprep.subr.mxu0 0.0
      %1412 = vmatpush1.msra.mxu0 0.0
      %1413 = vmatprep.subr.mxu0 0.0
      %1414 = vmatpush1.msra.mxu0 0.0
      %1415 = vmatprep.mubr.f32.mxu0 0.0
      %1416 = vmatmul.mubr.f32.gmra.mrb[0].mxu0 %v1073
      %v1417 = vpop.f32.mrb[0].mxu0
      %v1418 = vadd.f32 %v1054, %v1417
      %v1419 = vpop.f32.mrb[0].mxu0
      %v1420 = vadd.f32 %v1054, %v1419
      %1421 = vmatprep.mubr.f32.mxu0 0.0
      %1422 = vmatmul.mubr.f32.gmra.mrb[0].mxu0 %v1076
      %v1423 = vpop.f32.mrb[0].mxu0
      %v1424 = vadd.f32 %v1059, %v1423
      %v1425 = vpop.f32.mrb[0].mxu0
      %v1426 = vadd.f32 %v1059, %v1425
      %1427 = vmatprep.mubr.f32.mxu0 0.0
      %1428 = vmatmul.mubr.f32.gmra.mrb[0].mxu0 %v1079
      %v1429 = vpop.f32.mrb[0].mxu0
      %v1430 = vadd.f32 %v1064, %v1429
      %v1431 = vpop.f32.mrb[0].mxu0
      %v1432 = vadd.f32 %v1064, %v1431
      %1433 = vmatprep.mubr.f32.mxu0 0.0
      %1434 = vmatmul.mubr.f32.gmra.mrb[0].mxu0 %v1082
      %v1435 = vpop.f32.mrb[0].mxu0
      %v1436 = vadd.f32 %v1069, %v1435
      %v1437 = vpop.f32.mrb[0].mxu0
      %v1438 = vadd.f32 %v1069, %v1437
      %1439 = vdwg.mxu0
      %v1440 = vmax.f32 %v1151, 0.0
      %v1441 = vmax.f32 %v1153, 0.0
      %v1442 = vmax.f32 %v1240, 0.0
      %v1443 = vmax.f32 %v1242, 0.0
      %v1444 = vmax.f32 %v1329, 0.0
      %v1445 = vmax.f32 %v1331, 0.0
      %v1446 = vmax.f32 %v1418, 0.0
      %v1447 = vmax.f32 %v1420, 0.0
      %v1448 = vmax.f32 %v1157, 0.0
      %v1449 = vmax.f32 %v1159, 0.0
      %v1450 = vmax.f32 %v1246, 0.0
      %v1451 = vmax.f32 %v1248, 0.0
      %v1452 = vmax.f32 %v1335, 0.0
      %v1453 = vmax.f32 %v1337, 0.0
      %v1454 = vmax.f32 %v1424, 0.0
      %v1455 = vmax.f32 %v1426, 0.0
      %v1456 = vmax.f32 %v1163, 0.0
      %v1457 = vmax.f32 %v1165, 0.0
      %v1458 = vmax.f32 %v1252, 0.0
      %v1459 = vmax.f32 %v1254, 0.0
      %v1460 = vmax.f32 %v1341, 0.0
      %v1461 = vmax.f32 %v1343, 0.0
      %v1462 = vmax.f32 %v1430, 0.0
      %v1463 = vmax.f32 %v1432, 0.0
      %v1464 = vmax.f32 %v1169, 0.0
      %v1465 = vmax.f32 %v1171, 0.0
      %v1466 = vmax.f32 %v1258, 0.0
      %v1467 = vmax.f32 %v1260, 0.0
      %v1468 = vmax.f32 %v1347, 0.0
      %v1469 = vmax.f32 %v1349, 0.0
      %v1470 = vmax.f32 %v1436, 0.0
      %v1471 = vmax.f32 %v1438, 0.0
      %v1472 = vld [vmem:[%s3] sm:$0xff]
      %v1473 = vld [vmem:[%s3 + $0x8] sm:$0xff]
      %v1474 = vld [vmem:[%s3 + $0x10] sm:$0xf]
      %v1475 = vld [vmem:[%s4] sm:$0xff]
      %v1476 = vld [vmem:[%s4 + $0x8] sm:$0xff]
      %v1477 = vld [vmem:[%s4 + $0x10] sm:$0xf]
      %1479 = vset.pattern.permute.xlu0 0
      %1480 = vperm.xlu0 %1479, %v1475
      %v1481 = vpop.permute.xlu0 %1480
      %1484 = vset.pattern.permute.xlu0 0
      %1485 = vperm.xlu0 %1484, %v1476
      %v1486 = vpop.permute.xlu0 %1485
      %1489 = vset.pattern.permute.xlu0 0
      %1490 = vperm.xlu0 %1489, %v1477
      %v1491 = vpop.permute.xlu0 %1490
      %vm1493 = vcmask 261120
      %v1495 = vsel %vm1493, %v1472, 0
      %v1498 = vsel %vm1493, %v1473, 0
      %v1501 = vsel %vm1493, %v1474, 0
      %1503 = vmatprep.subr.mxu0 %v1441
      %1504 = vmatpush1.msra.mxu0 %v1440
      %1505 = vmatprep.subr.mxu0 %v1449
      %1506 = vmatpush1.msra.mxu0 %v1448
      %1507 = vmatprep.subr.mxu0 %v1457
      %1508 = vmatpush1.msra.mxu0 %v1456
      %1509 = vmatprep.subr.mxu0 %v1465
      %1510 = vmatpush1.msra.mxu0 %v1464
      %1511 = vmatprep.subr.mxu0 0.0
      %1512 = vmatpush1.msra.mxu0 0.0
      %1513 = vmatprep.subr.mxu0 0.0
      %1514 = vmatpush1.msra.mxu0 0.0
      %1515 = vmatprep.subr.mxu0 0.0
      %1516 = vmatpush1.msra.mxu0 0.0
      %1517 = vmatprep.subr.mxu0 0.0
      %1518 = vmatpush1.msra.mxu0 0.0
      %1519 = vmatprep.subr.mxu0 0.0
      %1520 = vmatpush1.msra.mxu0 0.0
      %1521 = vmatprep.subr.mxu0 0.0
      %1522 = vmatpush1.msra.mxu0 0.0
      %1523 = vmatprep.subr.mxu0 0.0
      %1524 = vmatpush1.msra.mxu0 0.0
      %1525 = vmatprep.subr.mxu0 0.0
      %1526 = vmatpush1.msra.mxu0 0.0
      %1527 = vmatprep.subr.mxu0 0.0
      %1528 = vmatpush1.msra.mxu0 0.0
      %1529 = vmatprep.subr.mxu0 0.0
      %1530 = vmatpush1.msra.mxu0 0.0
      %1531 = vmatprep.subr.mxu0 0.0
      %1532 = vmatpush1.msra.mxu0 0.0
      %1533 = vmatprep.subr.mxu0 0.0
      %1534 = vmatpush1.msra.mxu0 0.0
      %1535 = vmatprep.subr.mxu0 0.0
      %1536 = vmatpush1.msra.mxu0 0.0
      %1537 = vmatprep.subr.mxu0 0.0
      %1538 = vmatpush1.msra.mxu0 0.0
      %1539 = vmatprep.subr.mxu0 0.0
      %1540 = vmatpush1.msra.mxu0 0.0
      %1541 = vmatprep.subr.mxu0 0.0
      %1542 = vmatpush1.msra.mxu0 0.0
      %1543 = vmatprep.subr.mxu0 0.0
      %1544 = vmatpush1.msra.mxu0 0.0
      %1545 = vmatprep.subr.mxu0 0.0
      %1546 = vmatpush1.msra.mxu0 0.0
      %1547 = vmatprep.subr.mxu0 0.0
      %1548 = vmatpush1.msra.mxu0 0.0
      %1549 = vmatprep.subr.mxu0 0.0
      %1550 = vmatpush1.msra.mxu0 0.0
      %1551 = vmatprep.subr.mxu0 0.0
      %1552 = vmatpush1.msra.mxu0 0.0
      %1553 = vmatprep.subr.mxu0 0.0
      %1554 = vmatpush1.msra.mxu0 0.0
      %1555 = vmatprep.subr.mxu0 0.0
      %1556 = vmatpush1.msra.mxu0 0.0
      %1557 = vmatprep.subr.mxu0 0.0
      %1558 = vmatpush1.msra.mxu0 0.0
      %1559 = vmatprep.subr.mxu0 0.0
      %1560 = vmatpush1.msra.mxu0 0.0
      %1561 = vmatprep.subr.mxu0 0.0
      %1562 = vmatpush1.msra.mxu0 0.0
      %1563 = vmatprep.subr.mxu0 0.0
      %1564 = vmatpush1.msra.mxu0 0.0
      %1565 = vmatprep.subr.mxu0 0.0
      %1566 = vmatpush1.msra.mxu0 0.0
      %1567 = vmatprep.mubr.f32.mxu0 0.0
      %1568 = vmatmul.mubr.f32.gmra.mrb[0].mxu0 %v1495
      %v1569 = vpop.f32.mrb[0].mxu0
      %v1570 = vadd.f32 %v1481, %v1569
      %v1571 = vpop.f32.mrb[0].mxu0
      %v1572 = vadd.f32 %v1481, %v1571
      %1573 = vmatprep.mubr.f32.mxu0 0.0
      %1574 = vmatmul.mubr.f32.gmra.mrb[0].mxu0 %v1498
      %v1575 = vpop.f32.mrb[0].mxu0
      %v1576 = vadd.f32 %v1486, %v1575
      %v1577 = vpop.f32.mrb[0].mxu0
      %v1578 = vadd.f32 %v1486, %v1577
      %1579 = vmatprep.mubr.f32.mxu0 0.0
      %1580 = vmatmul.mubr.f32.gmra.mrb[0].mxu0 %v1501
      %v1581 = vpop.f32.mrb[0].mxu0
      %v1582 = vadd.f32 %v1491, %v1581
      %v1583 = vpop.f32.mrb[0].mxu0
      %v1584 = vadd.f32 %v1491, %v1583
      %1585 = vdwg.mxu0
      %1586 = vmatprep.subr.mxu0 %v1443
      %1587 = vmatpush1.msra.mxu0 %v1442
      %1588 = vmatprep.subr.mxu0 %v1451
      %1589 = vmatpush1.msra.mxu0 %v1450
      %1590 = vmatprep.subr.mxu0 %v1459
      %1591 = vmatpush1.msra.mxu0 %v1458
      %1592 = vmatprep.subr.mxu0 %v1467
      %1593 = vmatpush1.msra.mxu0 %v1466
      %1594 = vmatprep.subr.mxu0 0.0
      %1595 = vmatpush1.msra.mxu0 0.0
      %1596 = vmatprep.subr.mxu0 0.0
      %1597 = vmatpush1.msra.mxu0 0.0
      %1598 = vmatprep.subr.mxu0 0.0
      %1599 = vmatpush1.msra.mxu0 0.0
      %1600 = vmatprep.subr.mxu0 0.0
      %1601 = vmatpush1.msra.mxu0 0.0
      %1602 = vmatprep.subr.mxu0 0.0
      %1603 = vmatpush1.msra.mxu0 0.0
      %1604 = vmatprep.subr.mxu0 0.0
      %1605 = vmatpush1.msra.mxu0 0.0
      %1606 = vmatprep.subr.mxu0 0.0
      %1607 = vmatpush1.msra.mxu0 0.0
      %1608 = vmatprep.subr.mxu0 0.0
      %1609 = vmatpush1.msra.mxu0 0.0
      %1610 = vmatprep.subr.mxu0 0.0
      %1611 = vmatpush1.msra.mxu0 0.0
      %1612 = vmatprep.subr.mxu0 0.0
      %1613 = vmatpush1.msra.mxu0 0.0
      %1614 = vmatprep.subr.mxu0 0.0
      %1615 = vmatpush1.msra.mxu0 0.0
      %1616 = vmatprep.subr.mxu0 0.0
      %1617 = vmatpush1.msra.mxu0 0.0
      %1618 = vmatprep.subr.mxu0 0.0
      %1619 = vmatpush1.msra.mxu0 0.0
      %1620 = vmatprep.subr.mxu0 0.0
      %1621 = vmatpush1.msra.mxu0 0.0
      %1622 = vmatprep.subr.mxu0 0.0
      %1623 = vmatpush1.msra.mxu0 0.0
      %1624 = vmatprep.subr.mxu0 0.0
      %1625 = vmatpush1.msra.mxu0 0.0
      %1626 = vmatprep.subr.mxu0 0.0
      %1627 = vmatpush1.msra.mxu0 0.0
      %1628 = vmatprep.subr.mxu0 0.0
      %1629 = vmatpush1.msra.mxu0 0.0
      %1630 = vmatprep.subr.mxu0 0.0
      %1631 = vmatpush1.msra.mxu0 0.0
      %1632 = vmatprep.subr.mxu0 0.0
      %1633 = vmatpush1.msra.mxu0 0.0
      %1634 = vmatprep.subr.mxu0 0.0
      %1635 = vmatpush1.msra.mxu0 0.0
      %1636 = vmatprep.subr.mxu0 0.0
      %1637 = vmatpush1.msra.mxu0 0.0
      %1638 = vmatprep.subr.mxu0 0.0
      %1639 = vmatpush1.msra.mxu0 0.0
      %1640 = vmatprep.subr.mxu0 0.0
      %1641 = vmatpush1.msra.mxu0 0.0
      %1642 = vmatprep.subr.mxu0 0.0
      %1643 = vmatpush1.msra.mxu0 0.0
      %1644 = vmatprep.subr.mxu0 0.0
      %1645 = vmatpush1.msra.mxu0 0.0
      %1646 = vmatprep.subr.mxu0 0.0
      %1647 = vmatpush1.msra.mxu0 0.0
      %1648 = vmatprep.subr.mxu0 0.0
      %1649 = vmatpush1.msra.mxu0 0.0
      %1650 = vmatprep.mubr.f32.mxu0 0.0
      %1651 = vmatmul.mubr.f32.gmra.mrb[0].mxu0 %v1495
      %v1652 = vpop.f32.mrb[0].mxu0
      %v1653 = vadd.f32 %v1481, %v1652
      %v1654 = vpop.f32.mrb[0].mxu0
      %v1655 = vadd.f32 %v1481, %v1654
      %1656 = vmatprep.mubr.f32.mxu0 0.0
      %1657 = vmatmul.mubr.f32.gmra.mrb[0].mxu0 %v1498
      %v1658 = vpop.f32.mrb[0].mxu0
      %v1659 = vadd.f32 %v1486, %v1658
      %v1660 = vpop.f32.mrb[0].mxu0
      %v1661 = vadd.f32 %v1486, %v1660
      %1662 = vmatprep.mubr.f32.mxu0 0.0
      %1663 = vmatmul.mubr.f32.gmra.mrb[0].mxu0 %v1501
      %v1664 = vpop.f32.mrb[0].mxu0
      %v1665 = vadd.f32 %v1491, %v1664
      %v1666 = vpop.f32.mrb[0].mxu0
      %v1667 = vadd.f32 %v1491, %v1666
      %1668 = vdwg.mxu0
      %1669 = vmatprep.subr.mxu0 %v1445
      %1670 = vmatpush1.msra.mxu0 %v1444
      %1671 = vmatprep.subr.mxu0 %v1453
      %1672 = vmatpush1.msra.mxu0 %v1452
      %1673 = vmatprep.subr.mxu0 %v1461
      %1674 = vmatpush1.msra.mxu0 %v1460
      %1675 = vmatprep.subr.mxu0 %v1469
      %1676 = vmatpush1.msra.mxu0 %v1468
      %1677 = vmatprep.subr.mxu0 0.0
      %1678 = vmatpush1.msra.mxu0 0.0
      %1679 = vmatprep.subr.mxu0 0.0
      %1680 = vmatpush1.msra.mxu0 0.0
      %1681 = vmatprep.subr.mxu0 0.0
      %1682 = vmatpush1.msra.mxu0 0.0
      %1683 = vmatprep.subr.mxu0 0.0
      %1684 = vmatpush1.msra.mxu0 0.0
      %1685 = vmatprep.subr.mxu0 0.0
      %1686 = vmatpush1.msra.mxu0 0.0
      %1687 = vmatprep.subr.mxu0 0.0
      %1688 = vmatpush1.msra.mxu0 0.0
      %1689 = vmatprep.subr.mxu0 0.0
      %1690 = vmatpush1.msra.mxu0 0.0
      %1691 = vmatprep.subr.mxu0 0.0
      %1692 = vmatpush1.msra.mxu0 0.0
      %1693 = vmatprep.subr.mxu0 0.0
      %1694 = vmatpush1.msra.mxu0 0.0
      %1695 = vmatprep.subr.mxu0 0.0
      %1696 = vmatpush1.msra.mxu0 0.0
      %1697 = vmatprep.subr.mxu0 0.0
      %1698 = vmatpush1.msra.mxu0 0.0
      %1699 = vmatprep.subr.mxu0 0.0
      %1700 = vmatpush1.msra.mxu0 0.0
      %1701 = vmatprep.subr.mxu0 0.0
      %1702 = vmatpush1.msra.mxu0 0.0
      %1703 = vmatprep.subr.mxu0 0.0
      %1704 = vmatpush1.msra.mxu0 0.0
      %1705 = vmatprep.subr.mxu0 0.0
      %1706 = vmatpush1.msra.mxu0 0.0
      %1707 = vmatprep.subr.mxu0 0.0
      %1708 = vmatpush1.msra.mxu0 0.0
      %1709 = vmatprep.subr.mxu0 0.0
      %1710 = vmatpush1.msra.mxu0 0.0
      %1711 = vmatprep.subr.mxu0 0.0
      %1712 = vmatpush1.msra.mxu0 0.0
      %1713 = vmatprep.subr.mxu0 0.0
      %1714 = vmatpush1.msra.mxu0 0.0
      %1715 = vmatprep.subr.mxu0 0.0
      %1716 = vmatpush1.msra.mxu0 0.0
      %1717 = vmatprep.subr.mxu0 0.0
      %1718 = vmatpush1.msra.mxu0 0.0
      %1719 = vmatprep.subr.mxu0 0.0
      %1720 = vmatpush1.msra.mxu0 0.0
      %1721 = vmatprep.subr.mxu0 0.0
      %1722 = vmatpush1.msra.mxu0 0.0
      %1723 = vmatprep.subr.mxu0 0.0
      %1724 = vmatpush1.msra.mxu0 0.0
      %1725 = vmatprep.subr.mxu0 0.0
      %1726 = vmatpush1.msra.mxu0 0.0
      %1727 = vmatprep.subr.mxu0 0.0
      %1728 = vmatpush1.msra.mxu0 0.0
      %1729 = vmatprep.subr.mxu0 0.0
      %1730 = vmatpush1.msra.mxu0 0.0
      %1731 = vmatprep.subr.mxu0 0.0
      %1732 = vmatpush1.msra.mxu0 0.0
      %1733 = vmatprep.mubr.f32.mxu0 0.0
      %1734 = vmatmul.mubr.f32.gmra.mrb[0].mxu0 %v1495
      %v1735 = vpop.f32.mrb[0].mxu0
      %v1736 = vadd.f32 %v1481, %v1735
      %v1737 = vpop.f32.mrb[0].mxu0
      %v1738 = vadd.f32 %v1481, %v1737
      %1739 = vmatprep.mubr.f32.mxu0 0.0
      %1740 = vmatmul.mubr.f32.gmra.mrb[0].mxu0 %v1498
      %v1741 = vpop.f32.mrb[0].mxu0
      %v1742 = vadd.f32 %v1486, %v1741
      %v1743 = vpop.f32.mrb[0].mxu0
      %v1744 = vadd.f32 %v1486, %v1743
      %1745 = vmatprep.mubr.f32.mxu0 0.0
      %1746 = vmatmul.mubr.f32.gmra.mrb[0].mxu0 %v1501
      %v1747 = vpop.f32.mrb[0].mxu0
      %v1748 = vadd.f32 %v1491, %v1747
      %v1749 = vpop.f32.mrb[0].mxu0
      %v1750 = vadd.f32 %v1491, %v1749
      %1751 = vdwg.mxu0
      %1752 = vmatprep.subr.mxu0 %v1447
      %1753 = vmatpush1.msra.mxu0 %v1446
      %1754 = vmatprep.subr.mxu0 %v1455
      %1755 = vmatpush1.msra.mxu0 %v1454
      %1756 = vmatprep.subr.mxu0 %v1463
      %1757 = vmatpush1.msra.mxu0 %v1462
      %1758 = vmatprep.subr.mxu0 %v1471
      %1759 = vmatpush1.msra.mxu0 %v1470
      %1760 = vmatprep.subr.mxu0 0.0
      %1761 = vmatpush1.msra.mxu0 0.0
      %1762 = vmatprep.subr.mxu0 0.0
      %1763 = vmatpush1.msra.mxu0 0.0
      %1764 = vmatprep.subr.mxu0 0.0
      %1765 = vmatpush1.msra.mxu0 0.0
      %1766 = vmatprep.subr.mxu0 0.0
      %1767 = vmatpush1.msra.mxu0 0.0
      %1768 = vmatprep.subr.mxu0 0.0
      %1769 = vmatpush1.msra.mxu0 0.0
      %1770 = vmatprep.subr.mxu0 0.0
      %1771 = vmatpush1.msra.mxu0 0.0
      %1772 = vmatprep.subr.mxu0 0.0
      %1773 = vmatpush1.msra.mxu0 0.0
      %1774 = vmatprep.subr.mxu0 0.0
      %1775 = vmatpush1.msra.mxu0 0.0
      %1776 = vmatprep.subr.mxu0 0.0
      %1777 = vmatpush1.msra.mxu0 0.0
      %1778 = vmatprep.subr.mxu0 0.0
      %1779 = vmatpush1.msra.mxu0 0.0
      %1780 = vmatprep.subr.mxu0 0.0
      %1781 = vmatpush1.msra.mxu0 0.0
      %1782 = vmatprep.subr.mxu0 0.0
      %1783 = vmatpush1.msra.mxu0 0.0
      %1784 = vmatprep.subr.mxu0 0.0
      %1785 = vmatpush1.msra.mxu0 0.0
      %1786 = vmatprep.subr.mxu0 0.0
      %1787 = vmatpush1.msra.mxu0 0.0
      %1788 = vmatprep.subr.mxu0 0.0
      %1789 = vmatpush1.msra.mxu0 0.0
      %1790 = vmatprep.subr.mxu0 0.0
      %1791 = vmatpush1.msra.mxu0 0.0
      %1792 = vmatprep.subr.mxu0 0.0
      %1793 = vmatpush1.msra.mxu0 0.0
      %1794 = vmatprep.subr.mxu0 0.0
      %1795 = vmatpush1.msra.mxu0 0.0
      %1796 = vmatprep.subr.mxu0 0.0
      %1797 = vmatpush1.msra.mxu0 0.0
      %1798 = vmatprep.subr.mxu0 0.0
      %1799 = vmatpush1.msra.mxu0 0.0
      %1800 = vmatprep.subr.mxu0 0.0
      %1801 = vmatpush1.msra.mxu0 0.0
      %1802 = vmatprep.subr.mxu0 0.0
      %1803 = vmatpush1.msra.mxu0 0.0
      %1804 = vmatprep.subr.mxu0 0.0
      %1805 = vmatpush1.msra.mxu0 0.0
      %1806 = vmatprep.subr.mxu0 0.0
      %1807 = vmatpush1.msra.mxu0 0.0
      %1808 = vmatprep.subr.mxu0 0.0
      %1809 = vmatpush1.msra.mxu0 0.0
      %1810 = vmatprep.subr.mxu0 0.0
      %1811 = vmatpush1.msra.mxu0 0.0
      %1812 = vmatprep.subr.mxu0 0.0
      %1813 = vmatpush1.msra.mxu0 0.0
      %1814 = vmatprep.subr.mxu0 0.0
      %1815 = vmatpush1.msra.mxu0 0.0
      %1816 = vmatprep.mubr.f32.mxu0 0.0
      %1817 = vmatmul.mubr.f32.gmra.mrb[0].mxu0 %v1495
      %v1818 = vpop.f32.mrb[0].mxu0
      %v1819 = vadd.f32 %v1481, %v1818
      %v1820 = vpop.f32.mrb[0].mxu0
      %v1821 = vadd.f32 %v1481, %v1820
      %1822 = vmatprep.mubr.f32.mxu0 0.0
      %1823 = vmatmul.mubr.f32.gmra.mrb[0].mxu0 %v1498
      %v1824 = vpop.f32.mrb[0].mxu0
      %v1825 = vadd.f32 %v1486, %v1824
      %v1826 = vpop.f32.mrb[0].mxu0
      %v1827 = vadd.f32 %v1486, %v1826
      %1828 = vmatprep.mubr.f32.mxu0 0.0
      %1829 = vmatmul.mubr.f32.gmra.mrb[0].mxu0 %v1501
      %v1830 = vpop.f32.mrb[0].mxu0
      %v1831 = vadd.f32 %v1491, %v1830
      %v1832 = vpop.f32.mrb[0].mxu0
      %v1833 = vadd.f32 %v1491, %v1832
      %1834 = vdwg.mxu0
      %1835 = vst [vmem:[%s231] sm:$0xff] %v1570
      %1836 = vst [vmem:[%s231 + $0x8] sm:$0xff] %v1572
      %1837 = vst [vmem:[%s231 + $0x10] sm:$0xff] %v1576
      %1838 = vst [vmem:[%s231 + $0x18] sm:$0xff] %v1578
      %1839 = vst [vmem:[%s231 + $0x20] sm:$0xf] %v1582
      %1840 = vst [vmem:[%s231 + $0x28] sm:$0xf] %v1584
      %s1841 = scalar_lea.vmem %s231, 48
      %1842 = vst [vmem:[%s1841] sm:$0xff] %v1653
      %1843 = vst [vmem:[%s1841 + $0x8] sm:$0xff] %v1655
      %1844 = vst [vmem:[%s1841 + $0x10] sm:$0xff] %v1659
      %1845 = vst [vmem:[%s1841 + $0x18] sm:$0xff] %v1661
      %1846 = vst [vmem:[%s1841 + $0x20] sm:$0xf] %v1665
      %1847 = vst [vmem:[%s1841 + $0x28] sm:$0xf] %v1667
      %s1848 = scalar_lea.vmem %s231, 96
      %1849 = vst [vmem:[%s1848] sm:$0xff] %v1736
      %1850 = vst [vmem:[%s1848 + $0x8] sm:$0xff] %v1738
      %1851 = vst [vmem:[%s1848 + $0x10] sm:$0xff] %v1742
      %1852 = vst [vmem:[%s1848 + $0x18] sm:$0xff] %v1744
      %1853 = vst [vmem:[%s1848 + $0x20] sm:$0xf] %v1748
      %1854 = vst [vmem:[%s1848 + $0x28] sm:$0xf] %v1750
      %s1855 = scalar_lea.vmem %s231, 144
      %1856 = vst [vmem:[%s1855] sm:$0xff] %v1819
      %1857 = vst [vmem:[%s1855 + $0x8] sm:$0xff] %v1821
      %1858 = vst [vmem:[%s1855 + $0x10] sm:$0xff] %v1825
      %1859 = vst [vmem:[%s1855 + $0x18] sm:$0xff] %v1827
      %1860 = vst [vmem:[%s1855 + $0x20] sm:$0xf] %v1831
      %1861 = vst [vmem:[%s1855 + $0x28] sm:$0xf] %v1833
      %s1862 = smul.u32 4, %s16
      %p1863 = scmp.lt.s32.totalorder %s1862, 7
      %s1864 = scalar_select %p1863, %s1862, 7
      %s1865 = smul.addr %s1864, 6
      %s1866 = smul.addr %s1865, 8
      %s1867 = scalar_lea.vmem %s5, %s1866
      // Predicated region
      $region41: #{tpu_custom_call.1} parent=39 // pred_check
        %p1868 = pneg %p144
      $region42: #{tpu_custom_call.1} parent=39 // pred_check_branch
        %1870 = sbr.rel (%p1868) target = $region44
      $region43: #{tpu_custom_call.1} parent=39 // pred_region
        %s1871 = smul.u32 4, %s16
      $region44: #{tpu_custom_call.1} parent=39 // pred_fallthru
        _
    $region40: #{tpu_custom_call.1} parent=5 // pred_fallthru
      _
    %p1872 = scmp.le.s32.totalorder 2, %s11
    // Predicated region
    $region45: #{tpu_custom_call.1} parent=5 // pred_check
      %p1873 = pneg %p1872
    $region46: #{tpu_custom_call.1} parent=5 // pred_check_branch
      %1875 = sbr.rel (%p1873) target = $region48
    $region47: #{tpu_custom_call.1} parent=5 // pred_region
      %s1876 = ssub.s32 %s11, 2
      // Predicated region
      $region49: #{tpu_custom_call.1} parent=47 // pred_check
        %p1877 = pneg %p150
      $region50: #{tpu_custom_call.1} parent=47 // pred_check_branch
        %1879 = sbr.rel (%p1877) target = $region52
      $region51: #{tpu_custom_call.1} parent=47 // pred_region
        %s1880 = smul.u32 4, %s17
        %p1881 = scmp.lt.s32.totalorder %s1880, 7
        %s1882 = scalar_select %p1881, %s1880, 7
        %s1883 = smul.addr %s1882, 6
        %s1884 = smul.addr %s1883, 8
        %s1885 = scalar_lea.vmem %s5, %s1884
      $region52: #{tpu_custom_call.1} parent=47 // pred_fallthru
        _
    $region48: #{tpu_custom_call.1} parent=5 // pred_fallthru
      _
  $region6: #{tpu_custom_call.1} parent=0 // loop_footer
    %s15 = sadd.s32 1, %s11
  $region7: #{tpu_custom_call.1} parent=0 // loop_footer_branch
    %10 = sbr.rel target = $region3
  $region8: #{tpu_custom_call.1} parent=0 // loop_exit
    _

</llo_original>
